<compile_context>
chip_gen: v7x
topology: tpu7x:2x2x1
jax: 0.10.0
libtpu: 0.0.40
codegen_flags: <defaults>
</compile_context>

<pallas_src>
from functools import partial

import jax
import jax.numpy as jnp
from jax.experimental import pallas as pl
from jax.experimental.pallas import tpu as pltpu

EPS = 1e-8            # torch.cosine_similarity eps
_LANE = 128
_SUBLANE = 8


def _round_up(x, m):
    return ((x + m - 1) // m) * m


def _vmem_capacity_bytes():
    """Physical VMEM per core; conservative 64 MiB fallback (v7x-safe)."""
    try:
        return int(getattr(pltpu.get_tpu_info(), "vmem_capacity_bytes",
                           64 * 1024 * 1024))
    except Exception:
        return 64 * 1024 * 1024


def _choose_ti(lu_pad, lp_pad, n_pad, w_itemsize, vmem_cap):
    """Utterance rows per grid step: largest multiple-of-8 divisor of lu_pad whose
    double-buffered weight block stays within ~1/4 of physical VMEM."""
    budget = vmem_cap // 4
    cap = max(_SUBLANE, budget // (2 * lp_pad * n_pad * w_itemsize))
    cap = min(cap, 32, lu_pad)          # 32 keeps the in-kernel slab-copy unroll short
    ti = _SUBLANE
    for cand in range(_SUBLANE, cap + 1, _SUBLANE):
        if lu_pad % cand == 0:
            ti = cand
    return ti


def _fused_kernel(u_ref, p_ref, w_ref, b_ref, row_ref, col_ref,
                  acc_ref, pn_ref, c2_ref, *, utt_len, pheno_len, nu_pad):
    # u_ref:   (tb, ti, D)          batch-major utterance rows of this k-tile
    # p_ref:   (tb, Lp_pad, D)      padded phenotype block (resident across k)
    # w_ref:   (ti*Lp_pad, n_pad)   merged-K conv weights for this k-tile
    # b_ref:   (1, n_pad)           prepped bias
    # row_ref: (tb, utt_len) / col_ref: (tb, pheno_len)
    # acc_ref: (tb, n_pad)   f32 logits accumulator           (VMEM scratch)
    # pn_ref:  (tb, Lp_pad)  phenotype norms, computed at k==0 (VMEM scratch)
    # c2_ref:  (tb, ti*Lp_pad) merged cosine tile, weight dtype (VMEM scratch)
    k = pl.program_id(1)
    ti = u_ref.shape[1]
    lp_pad = p_ref.shape[1]

    @pl.when(k == 0)
    def _init():
        acc_ref[...] = jnp.zeros_like(acc_ref)
        p0 = p_ref[...].astype(jnp.float32)
        pn_ref[...] = jnp.sqrt(jnp.sum(p0 * p0, axis=-1))      # hoisted out of k

    u = u_ref[...].astype(jnp.float32)                          # (tb, ti, D)
    p = p_ref[...].astype(jnp.float32)                          # (tb, Lp_pad, D)

    # Cosine numerators on the MXU (batched over the batch dim).
    dots = jnp.einsum("bid,bjd->bij", u, p,
                      preferred_element_type=jnp.float32)       # (tb, ti, Lp_pad)
    nu = jnp.sqrt(jnp.sum(u * u, axis=-1))                      # (tb, ti)
    denom = nu[:, :, None] * pn_ref[...][:, None, :]            # (tb, ti, Lp_pad)
    c = dots * pl.reciprocal(jnp.maximum(denom, EPS), approx=True)

    # Merge (i, j) -> one K axis with lane-aligned slab stores (Lp_pad % 128 == 0),
    # casting to the weight dtype on the way.  ti is small (<= 32) by construction.
    for i in range(ti):
        c2_ref[:, i * lp_pad:(i + 1) * lp_pad] = c[:, i, :].astype(c2_ref.dtype)

    # One big MXU matmul per grid step: (tb, ti*Lp_pad) @ (ti*Lp_pad, n_pad).
    acc_ref[...] += jnp.dot(c2_ref[...], w_ref[...],
                            preferred_element_type=jnp.float32)

    @pl.when(k == pl.num_programs(1) - 1)
    def _finalize():
        logits = acc_ref[...] + b_ref[...]                      # (tb, n_pad)
        ru = logits[:, :utt_len]
        eu = jnp.exp(ru - jnp.max(ru, axis=-1, keepdims=True))
        row_ref[...] = (eu / jnp.sum(eu, axis=-1, keepdims=True)
                        ).astype(row_ref.dtype)
        rp = logits[:, nu_pad:nu_pad + pheno_len]               # 128-aligned offset
        ep = jnp.exp(rp - jnp.max(rp, axis=-1, keepdims=True))
        col_ref[...] = (ep / jnp.sum(ep, axis=-1, keepdims=True)
                        ).astype(col_ref.dtype)


def prep_cross_attention_params(params, max_utt_len, max_pheno_len,
                                weight_dtype=jnp.bfloat16):
    """One-time re-layout of the Conv1d parameters (hoisted out of forward).

    Both convs are merged into a single 2-D matrix whose row index is the merged
    contraction index (i * Lp_pad + j) and whose column index is the padded output
    index.  W[i*Lp_pad + j, o] = utt_conv.weight[o, i, j]  for o < Lu, and
    W[i*Lp_pad + j, nu_pad + o] = pheno_conv.weight[o, j, i].  Segments are padded
    to 128-lane boundaries; j is padded to Lp_pad so each K chunk is lane-aligned.
    weight_dtype=bf16 halves the dominant weight HBM stream (f32 accumulation).
    """
    wu, bu, wp, bp = params["wu"], params["bu"], params["wp"], params["bp"]
    Lu, Lp = max_utt_len, max_pheno_len
    lu_pad = _round_up(Lu, _SUBLANE)
    lp_pad = _round_up(Lp, _LANE)
    nu_pad = _round_up(Lu, _LANE)
    np_pad = _round_up(Lp, _LANE)

    w_row = jnp.transpose(wu, (1, 2, 0))        # (Lu, Lp, Lu)  W[i,j,o] = wu[o,i,j]
    w_col = jnp.transpose(wp, (2, 1, 0))        # (Lu, Lp, Lp)  W[i,j,o] = wp[o,j,i]
    w_row = jnp.pad(w_row, ((0, lu_pad - Lu), (0, lp_pad - Lp), (0, nu_pad - Lu)))
    w_col = jnp.pad(w_col, ((0, lu_pad - Lu), (0, lp_pad - Lp), (0, np_pad - Lp)))
    w = jnp.concatenate([w_row, w_col], axis=-1)             # (lu_pad, lp_pad, n_pad)
    w = w.reshape(lu_pad * lp_pad, w.shape[-1]).astype(weight_dtype)

    bias = jnp.concatenate([jnp.pad(bu, (0, nu_pad - Lu)),
                            jnp.pad(bp, (0, np_pad - Lp))])[None, :]
    return dict(w=w, bias=bias.astype(jnp.float32),
                nu_pad=nu_pad, lu_pad=lu_pad, lp_pad=lp_pad)


def cross_attention_forward(utt_output, pheno_output, prepped,
                            max_utt_len, max_pheno_len):
    w, bias = prepped["w"], prepped["bias"]
    nu_pad, lu_pad, lp_pad = prepped["nu_pad"], prepped["lu_pad"], prepped["lp_pad"]
    n_pad = w.shape[-1]
    utt_len, B, D = utt_output.shape
    pheno_len = pheno_output.shape[0]

    # Input-sized XLA glue: batch-major activations, zero-padded sequence dims
    # (extra rows/cols beyond max_*_len meet zero weights, so they contribute 0).
    u = jnp.pad(jnp.transpose(utt_output, (1, 0, 2)),
                ((0, 0), (0, lu_pad - utt_len), (0, 0)))      # (B, lu_pad, D)
    p = jnp.pad(jnp.transpose(pheno_output, (1, 0, 2)),
                ((0, 0), (0, lp_pad - pheno_len), (0, 0)))    # (B, lp_pad, D)

    # Single batch tile: the weight index_map ignores the batch axis, so this
    # streams the conv weights from HBM exactly once per forward.
    tb = B
    cap = _vmem_capacity_bytes()
    w_item = jnp.dtype(w.dtype).itemsize
    ti = _choose_ti(lu_pad, lp_pad, n_pad, w_item, cap)

    # Approximate VMEM need (double-buffered blocks + scratch) -> scoped limit.
    need = (2 * (tb * ti * D * 4 + tb * lp_pad * D * 4
                 + ti * lp_pad * n_pad * w_item + n_pad * 4
                 + tb * utt_len * 4 + tb * pheno_len * 4)
            + tb * n_pad * 4 + tb * lp_pad * 4 + tb * ti * lp_pad * w_item)
    vlimit = int(min(max(32 * 1024 * 1024, 1.3 * need), 0.75 * cap))

    kern = partial(_fused_kernel, utt_len=utt_len, pheno_len=pheno_len,
                   nu_pad=nu_pad)
    row, col = pl.pallas_call(
        kern,
        out_shape=(jax.ShapeDtypeStruct((B, utt_len), jnp.float32),
                   jax.ShapeDtypeStruct((B, pheno_len), jnp.float32)),
        grid_spec=pltpu.PrefetchScalarGridSpec(
            num_scalar_prefetch=0,
            grid=(B // tb, lu_pad // ti),
            in_specs=[
                pl.BlockSpec((tb, ti, D), lambda b, k: (b, k, 0)),        # utt rows
                pl.BlockSpec((tb, lp_pad, D), lambda b, k: (b, 0, 0)),    # pheno (k-resident)
                pl.BlockSpec((ti * lp_pad, n_pad), lambda b, k: (k, 0)),  # merged conv weights
                pl.BlockSpec((1, n_pad), lambda b, k: (0, 0)),            # bias
            ],
            out_specs=(pl.BlockSpec((tb, utt_len), lambda b, k: (b, 0)),
                       pl.BlockSpec((tb, pheno_len), lambda b, k: (b, 0))),
            scratch_shapes=[pltpu.VMEM((tb, n_pad), jnp.float32),         # acc
                            pltpu.VMEM((tb, lp_pad), jnp.float32),        # pheno norms
                            pltpu.VMEM((tb, ti * lp_pad), w.dtype)]),     # merged cosine tile
        compiler_params=pltpu.CompilerParams(
            dimension_semantics=("parallel", "arbitrary"),
            vmem_limit_bytes=vlimit),
    )(u, p, w, bias)
    # TODO(synk): on v7x (2 TCs) a second "parallel" grid axis over the two output
    # segments would let both cores split the weight stream when B//tb == 1.
    return row, col


def init_params(key, max_utt_len, max_pheno_len):
    # Conv1d-shaped parameters, deterministic uniform init (torch-style fan-in bound)
    k1, k2, k3, k4 = jax.random.split(key, 4)
    bnd_u = 1.0 / (max_utt_len * max_pheno_len) ** 0.5
    bnd_p = 1.0 / (max_pheno_len * max_utt_len) ** 0.5
    wu = jax.random.uniform(k1, (max_utt_len, max_utt_len, max_pheno_len),
                            jnp.float32, -bnd_u, bnd_u)
    bu = jax.random.uniform(k2, (max_utt_len,), jnp.float32, -bnd_u, bnd_u)
    wp = jax.random.uniform(k3, (max_pheno_len, max_pheno_len, max_utt_len),
                            jnp.float32, -bnd_p, bnd_p)
    bp = jax.random.uniform(k4, (max_pheno_len,), jnp.float32, -bnd_p, bnd_p)
    return dict(wu=wu, bu=bu, wp=wp, bp=bp)


def reference(utt_output, pheno_output, params, max_utt_len, max_pheno_len):
    # pure-JAX reference (mirrors the PyTorch forward, uses the RAW conv params)
    wu, bu, wp, bp = params["wu"], params["bu"], params["wp"], params["bp"]
    u = jnp.transpose(utt_output, (1, 0, 2))
    p = jnp.transpose(pheno_output, (1, 0, 2))
    B, utt_len, _ = u.shape
    _, pheno_len, _ = p.shape
    u = jnp.pad(u, ((0, 0), (0, max_utt_len - utt_len), (0, 0)))
    p = jnp.pad(p, ((0, 0), (0, max_pheno_len - pheno_len), (0, 0)))
    dots = jnp.einsum("bid,bjd->bij", u, p)
    nu = jnp.linalg.norm(u, axis=-1)
    pn = jnp.linalg.norm(p, axis=-1)
    c = dots / jnp.maximum(nu[:, :, None] * pn[:, None, :], EPS)
    row_logits = jnp.einsum("bij,oij->bo", c, wu) + bu
    col_logits = jnp.einsum("bij,oji->bo", c, wp) + bp
    row = jax.nn.softmax(row_logits[:, :utt_len], axis=-1)
    col = jax.nn.softmax(col_logits[:, :pheno_len], axis=-1)
    return row, col


if __name__ == "__main__":
    key = jax.random.PRNGKey(0)
    kx, kp, kw = jax.random.split(key, 3)

    max_utt_len, max_pheno_len = 8, 6
    batch, utt_len, pheno_len, hid = 2, 5, 3, 32

    utt_output = jax.random.normal(kx, (utt_len, batch, hid), jnp.float32)
    pheno_output = jax.random.normal(kp, (pheno_len, batch, hid), jnp.float32)
    params = init_params(kw, max_utt_len, max_pheno_len)

    row_ref, col_ref = reference(utt_output, pheno_output, params,
                                 max_utt_len, max_pheno_len)

    # f32-weight run: checks the kernel math / weight re-layout.
    prepped32 = prep_cross_attention_params(params, max_utt_len, max_pheno_len,
                                            weight_dtype=jnp.float32)
    row32, col32 = cross_attention_forward(utt_output, pheno_output, prepped32,
                                           max_utt_len, max_pheno_len)
    row32 = jax.block_until_ready(row32)
    col32 = jax.block_until_ready(col32)
    assert row32.shape == (batch, utt_len) and col32.shape == (batch, pheno_len)
    assert jnp.allclose(row32, row_ref, atol=2e-2, rtol=2e-2)
    assert jnp.allclose(col32, col_ref, atol=2e-2, rtol=2e-2)

    # bf16-weight run (default): halves the dominant weight HBM stream.
    prepped = prep_cross_attention_params(params, max_utt_len, max_pheno_len)
    row, col = cross_attention_forward(utt_output, pheno_output, prepped,
                                       max_utt_len, max_pheno_len)
    row = jax.block_until_ready(row)
    col = jax.block_until_ready(col)
    assert jnp.allclose(row, row_ref, atol=5e-2, rtol=5e-2)
    assert jnp.allclose(col, col_ref, atol=5e-2, rtol=5e-2)

    print("KERNEL_OK")
</pallas_src>

<mosaic_0001>
module attributes {stable_mosaic.version = 11 : i64} {
  func.func @_fused_kernel(%arg0: i32, %arg1: i32, %arg2: memref<2x8x32xf32, #tpu.memory_space<vmem>>, %arg3: memref<2x128x32xf32, #tpu.memory_space<vmem>>, %arg4: memref<1024x256xf32, #tpu.memory_space<vmem>>, %arg5: memref<1x256xf32, #tpu.memory_space<vmem>>, %arg6: memref<2x5xf32, #tpu.memory_space<vmem>>, %arg7: memref<2x3xf32, #tpu.memory_space<vmem>>, %arg8: memref<2x256xf32, #tpu.memory_space<vmem>>, %arg9: memref<2x128xf32, #tpu.memory_space<vmem>>, %arg10: memref<2x1024xf32, #tpu.memory_space<vmem>>) attributes {dimension_semantics = [#tpu.dimension_semantics<parallel>, #tpu.dimension_semantics<arbitrary>], iteration_bounds = array<i64: 1, 1>, scalar_prefetch = 0 : i64, scratch_operands = 3 : i64, tpu.core_type = #tpu.core_type<tc>, window_params = [{transform_indices = @transform_0, window_bounds = array<i64: 2, 8, 32>}, {transform_indices = @transform_1, window_bounds = array<i64: 2, 128, 32>}, {transform_indices = @transform_2, window_bounds = array<i64: 1024, 256>}, {pipeline_mode = #tpu.pipeline_mode<synchronous>, transform_indices = @transform_3, window_bounds = array<i64: 1, 256>}, {transform_indices = @transform_4, window_bounds = array<i64: 2, 5>}, {transform_indices = @transform_5, window_bounds = array<i64: 2, 3>}]} {
    %c0_i32 = arith.constant 0 : i32
    %0 = arith.cmpi eq, %arg1, %c0_i32 : i32
    %1 = arith.extui %0 : i1 to i32
    %c0_i32_0 = arith.constant 0 : i32
    %2 = arith.cmpi ne, %1, %c0_i32_0 : i32
    scf.if %2 {
      %cst_30 = arith.constant 0.000000e+00 : f32
      %52 = vector.broadcast %cst_30 : f32 to vector<2x256xf32>
      %c0_31 = arith.constant 0 : index
      %c0_32 = arith.constant 0 : index
      %53 = vector.load %arg8[%c0_31, %c0_32] : memref<2x256xf32, #tpu.memory_space<vmem>>, vector<2x256xf32>
      tpu.vector_store %arg8[%c0_31, %c0_32], %52 {strides = array<i32>} : memref<2x256xf32, #tpu.memory_space<vmem>>, vector<2x256xf32>,
      %c0_33 = arith.constant 0 : index
      %c0_34 = arith.constant 0 : index
      %c0_35 = arith.constant 0 : index
      %54 = vector.load %arg3[%c0_33, %c0_34, %c0_35] : memref<2x128x32xf32, #tpu.memory_space<vmem>>, vector<2x128x32xf32>
      %55 = arith.mulf %54, %54 : vector<2x128x32xf32>
      %cst_36 = arith.constant dense<0.000000e+00> : vector<2x128xf32>
      %56 = vector.multi_reduction <add>, %55, %cst_36 [2] : vector<2x128x32xf32> to vector<2x128xf32>
      %57 = math.sqrt %56 : vector<2x128xf32>
      %c0_37 = arith.constant 0 : index
      %c0_38 = arith.constant 0 : index
      %58 = vector.load %arg9[%c0_37, %c0_38] : memref<2x128xf32, #tpu.memory_space<vmem>>, vector<2x128xf32>
      tpu.vector_store %arg9[%c0_37, %c0_38], %57 {strides = array<i32>} : memref<2x128xf32, #tpu.memory_space<vmem>>, vector<2x128xf32>,
    } else {
    }
    %c0 = arith.constant 0 : index
    %c0_1 = arith.constant 0 : index
    %c0_2 = arith.constant 0 : index
    %3 = vector.load %arg2[%c0, %c0_1, %c0_2] : memref<2x8x32xf32, #tpu.memory_space<vmem>>, vector<2x8x32xf32>
    %c0_3 = arith.constant 0 : index
    %c0_4 = arith.constant 0 : index
    %c0_5 = arith.constant 0 : index
    %4 = vector.load %arg3[%c0_3, %c0_4, %c0_5] : memref<2x128x32xf32, #tpu.memory_space<vmem>>, vector<2x128x32xf32>
    "tpu.trace_start"() <{level = 10 : i32, message = "bid,bjd->bij"}> : () -> ()
    %cst = arith.constant dense<0.000000e+00> : vector<2x8x128xf32>
    %5 = tpu.matmul %3, %4, %cst {dimension_numbers = #tpu.dot_dimension_numbers<[2], [2], [1], [1], [0, 0, 0, 1, 1, 1], [0], [0]>} : vector<2x8x32xf32>, vector<2x128x32xf32>, vector<2x8x128xf32> -> vector<2x8x128xf32>
    "tpu.trace_stop"() : () -> ()
    %6 = arith.mulf %3, %3 : vector<2x8x32xf32>
    %cst_6 = arith.constant dense<0.000000e+00> : vector<2x8xf32>
    %7 = vector.multi_reduction <add>, %6, %cst_6 [2] : vector<2x8x32xf32> to vector<2x8xf32>
    %8 = math.sqrt %7 : vector<2x8xf32>
    %9 = vector.shape_cast %8 : vector<2x8xf32> to vector<2x8x1xf32>
    %c0_7 = arith.constant 0 : index
    %c0_8 = arith.constant 0 : index
    %10 = vector.load %arg9[%c0_7, %c0_8] : memref<2x128xf32, #tpu.memory_space<vmem>>, vector<2x128xf32>
    %11 = vector.shape_cast %10 : vector<2x128xf32> to vector<2x1x128xf32>
    %12 = vector.broadcast %9 : vector<2x8x1xf32> to vector<2x8x128xf32>
    %13 = vector.broadcast %11 : vector<2x1x128xf32> to vector<2x8x128xf32>
    %14 = arith.mulf %12, %13 : vector<2x8x128xf32>
    %cst_9 = arith.constant 9.99999993E-9 : f32
    %15 = vector.broadcast %cst_9 : f32 to vector<2x8x128xf32>
    %16 = arith.maximumf %14, %15 : vector<2x8x128xf32>
    %17 = tpu.reciprocal %16 {approx = true} : vector<2x8x128xf32> -> vector<2x8x128xf32>
    %18 = arith.mulf %5, %17 : vector<2x8x128xf32>
    %19 = vector.extract_strided_slice %18 {offsets = [0, 0, 0], sizes = [2, 1, 128], strides = [1, 1, 1]} : vector<2x8x128xf32> to vector<2x1x128xf32>
    %20 = vector.shape_cast %19 : vector<2x1x128xf32> to vector<2x128xf32>
    %c0_10 = arith.constant 0 : index
    %c0_11 = arith.constant 0 : index
    %21 = vector.load %arg10[%c0_10, %c0_11] : memref<2x1024xf32, #tpu.memory_space<vmem>>, vector<2x128xf32>
    tpu.vector_store %arg10[%c0_10, %c0_11], %20 {strides = array<i32>} : memref<2x1024xf32, #tpu.memory_space<vmem>>, vector<2x128xf32>,
    %22 = vector.extract_strided_slice %18 {offsets = [0, 1, 0], sizes = [2, 1, 128], strides = [1, 1, 1]} : vector<2x8x128xf32> to vector<2x1x128xf32>
    %23 = vector.shape_cast %22 : vector<2x1x128xf32> to vector<2x128xf32>
    %c0_12 = arith.constant 0 : index
    %c128 = arith.constant 128 : index
    %24 = vector.load %arg10[%c0_12, %c128] : memref<2x1024xf32, #tpu.memory_space<vmem>>, vector<2x128xf32>
    tpu.vector_store %arg10[%c0_12, %c128], %23 {strides = array<i32>} : memref<2x1024xf32, #tpu.memory_space<vmem>>, vector<2x128xf32>,
    %25 = vector.extract_strided_slice %18 {offsets = [0, 2, 0], sizes = [2, 1, 128], strides = [1, 1, 1]} : vector<2x8x128xf32> to vector<2x1x128xf32>
    %26 = vector.shape_cast %25 : vector<2x1x128xf32> to vector<2x128xf32>
    %c0_13 = arith.constant 0 : index
    %c256 = arith.constant 256 : index
    %27 = vector.load %arg10[%c0_13, %c256] : memref<2x1024xf32, #tpu.memory_space<vmem>>, vector<2x128xf32>
    tpu.vector_store %arg10[%c0_13, %c256], %26 {strides = array<i32>} : memref<2x1024xf32, #tpu.memory_space<vmem>>, vector<2x128xf32>,
    %28 = vector.extract_strided_slice %18 {offsets = [0, 3, 0], sizes = [2, 1, 128], strides = [1, 1, 1]} : vector<2x8x128xf32> to vector<2x1x128xf32>
    %29 = vector.shape_cast %28 : vector<2x1x128xf32> to vector<2x128xf32>
    %c0_14 = arith.constant 0 : index
    %c384 = arith.constant 384 : index
    %30 = vector.load %arg10[%c0_14, %c384] : memref<2x1024xf32, #tpu.memory_space<vmem>>, vector<2x128xf32>
    tpu.vector_store %arg10[%c0_14, %c384], %29 {strides = array<i32>} : memref<2x1024xf32, #tpu.memory_space<vmem>>, vector<2x128xf32>,
    %31 = vector.extract_strided_slice %18 {offsets = [0, 4, 0], sizes = [2, 1, 128], strides = [1, 1, 1]} : vector<2x8x128xf32> to vector<2x1x128xf32>
    %32 = vector.shape_cast %31 : vector<2x1x128xf32> to vector<2x128xf32>
    %c0_15 = arith.constant 0 : index
    %c512 = arith.constant 512 : index
    %33 = vector.load %arg10[%c0_15, %c512] : memref<2x1024xf32, #tpu.memory_space<vmem>>, vector<2x128xf32>
    tpu.vector_store %arg10[%c0_15, %c512], %32 {strides = array<i32>} : memref<2x1024xf32, #tpu.memory_space<vmem>>, vector<2x128xf32>,
    %34 = vector.extract_strided_slice %18 {offsets = [0, 5, 0], sizes = [2, 1, 128], strides = [1, 1, 1]} : vector<2x8x128xf32> to vector<2x1x128xf32>
    %35 = vector.shape_cast %34 : vector<2x1x128xf32> to vector<2x128xf32>
    %c0_16 = arith.constant 0 : index
    %c640 = arith.constant 640 : index
    %36 = vector.load %arg10[%c0_16, %c640] : memref<2x1024xf32, #tpu.memory_space<vmem>>, vector<2x128xf32>
    tpu.vector_store %arg10[%c0_16, %c640], %35 {strides = array<i32>} : memref<2x1024xf32, #tpu.memory_space<vmem>>, vector<2x128xf32>,
    %37 = vector.extract_strided_slice %18 {offsets = [0, 6, 0], sizes = [2, 1, 128], strides = [1, 1, 1]} : vector<2x8x128xf32> to vector<2x1x128xf32>
    %38 = vector.shape_cast %37 : vector<2x1x128xf32> to vector<2x128xf32>
    %c0_17 = arith.constant 0 : index
    %c768 = arith.constant 768 : index
    %39 = vector.load %arg10[%c0_17, %c768] : memref<2x1024xf32, #tpu.memory_space<vmem>>, vector<2x128xf32>
    tpu.vector_store %arg10[%c0_17, %c768], %38 {strides = array<i32>} : memref<2x1024xf32, #tpu.memory_space<vmem>>, vector<2x128xf32>,
    %40 = vector.extract_strided_slice %18 {offsets = [0, 7, 0], sizes = [2, 1, 128], strides = [1, 1, 1]} : vector<2x8x128xf32> to vector<2x1x128xf32>
    %41 = vector.shape_cast %40 : vector<2x1x128xf32> to vector<2x128xf32>
    %c0_18 = arith.constant 0 : index
    %c896 = arith.constant 896 : index
    %42 = vector.load %arg10[%c0_18, %c896] : memref<2x1024xf32, #tpu.memory_space<vmem>>, vector<2x128xf32>
    tpu.vector_store %arg10[%c0_18, %c896], %41 {strides = array<i32>} : memref<2x1024xf32, #tpu.memory_space<vmem>>, vector<2x128xf32>,
    %c0_19 = arith.constant 0 : index
    %c0_20 = arith.constant 0 : index
    %43 = vector.load %arg8[%c0_19, %c0_20] : memref<2x256xf32, #tpu.memory_space<vmem>>, vector<2x256xf32>
    %c0_21 = arith.constant 0 : index
    %c0_22 = arith.constant 0 : index
    %44 = vector.load %arg10[%c0_21, %c0_22] : memref<2x1024xf32, #tpu.memory_space<vmem>>, vector<2x1024xf32>
    %c0_23 = arith.constant 0 : index
    %c0_24 = arith.constant 0 : index
    %45 = vector.load %arg4[%c0_23, %c0_24] : memref<1024x256xf32, #tpu.memory_space<vmem>>, vector<1024x256xf32>
    %cst_25 = arith.constant dense<0.000000e+00> : vector<2x256xf32>
    %46 = tpu.matmul %44, %45, %cst_25 {dimension_numbers = #tpu.dot_dimension_numbers<[1], [0], [0], [1], [0, 0, 1, 1], [], []>} : vector<2x1024xf32>, vector<1024x256xf32>, vector<2x256xf32> -> vector<2x256xf32>
    %47 = arith.addf %43, %46 : vector<2x256xf32>
    %c0_26 = arith.constant 0 : index
    %c0_27 = arith.constant 0 : index
    %48 = vector.load %arg8[%c0_26, %c0_27] : memref<2x256xf32, #tpu.memory_space<vmem>>, vector<2x256xf32>
    tpu.vector_store %arg8[%c0_26, %c0_27], %47 {strides = array<i32>} : memref<2x256xf32, #tpu.memory_space<vmem>>, vector<2x256xf32>,
    %c0_i32_28 = arith.constant 0 : i32
    %49 = arith.cmpi eq, %arg1, %c0_i32_28 : i32
    %50 = arith.extui %49 : i1 to i32
    %c0_i32_29 = arith.constant 0 : i32
    %51 = arith.cmpi ne, %50, %c0_i32_29 : i32
    scf.if %51 {
      %c0_30 = arith.constant 0 : index
      %c0_31 = arith.constant 0 : index
      %52 = vector.load %arg8[%c0_30, %c0_31] : memref<2x256xf32, #tpu.memory_space<vmem>>, vector<2x256xf32>
      %c0_32 = arith.constant 0 : index
      %c0_33 = arith.constant 0 : index
      %53 = vector.load %arg5[%c0_32, %c0_33] : memref<1x256xf32, #tpu.memory_space<vmem>>, vector<1x256xf32>
      %54 = vector.broadcast %53 : vector<1x256xf32> to vector<2x256xf32>
      %55 = arith.addf %52, %54 : vector<2x256xf32>
      %56 = vector.extract_strided_slice %55 {offsets = [0, 0], sizes = [2, 5], strides = [1, 1]} : vector<2x256xf32> to vector<2x5xf32>
      %cst_34 = arith.constant dense<0xFF800000> : vector<2xf32>
      %57 = vector.multi_reduction <maximumf>, %56, %cst_34 [1] : vector<2x5xf32> to vector<2xf32>
      %58 = vector.shape_cast %57 : vector<2xf32> to vector<2x1xf32>
      %59 = vector.broadcast %58 : vector<2x1xf32> to vector<2x5xf32>
      %60 = arith.subf %56, %59 : vector<2x5xf32>
      %61 = math.exp %60 : vector<2x5xf32>
      %cst_35 = arith.constant dense<0.000000e+00> : vector<2xf32>
      %62 = vector.multi_reduction <add>, %61, %cst_35 [1] : vector<2x5xf32> to vector<2xf32>
      %63 = vector.shape_cast %62 : vector<2xf32> to vector<2x1xf32>
      %64 = vector.broadcast %63 : vector<2x1xf32> to vector<2x5xf32>
      %65 = arith.divf %61, %64 : vector<2x5xf32>
      %c0_36 = arith.constant 0 : index
      %c0_37 = arith.constant 0 : index
      %66 = vector.load %arg6[%c0_36, %c0_37] : memref<2x5xf32, #tpu.memory_space<vmem>>, vector<2x5xf32>
      tpu.vector_store %arg6[%c0_36, %c0_37], %65 {strides = array<i32>} : memref<2x5xf32, #tpu.memory_space<vmem>>, vector<2x5xf32>,
      %67 = vector.extract_strided_slice %55 {offsets = [0, 128], sizes = [2, 3], strides = [1, 1]} : vector<2x256xf32> to vector<2x3xf32>
      %cst_38 = arith.constant dense<0xFF800000> : vector<2xf32>
      %68 = vector.multi_reduction <maximumf>, %67, %cst_38 [1] : vector<2x3xf32> to vector<2xf32>
      %69 = vector.shape_cast %68 : vector<2xf32> to vector<2x1xf32>
      %70 = vector.broadcast %69 : vector<2x1xf32> to vector<2x3xf32>
      %71 = arith.subf %67, %70 : vector<2x3xf32>
      %72 = math.exp %71 : vector<2x3xf32>
      %cst_39 = arith.constant dense<0.000000e+00> : vector<2xf32>
      %73 = vector.multi_reduction <add>, %72, %cst_39 [1] : vector<2x3xf32> to vector<2xf32>
      %74 = vector.shape_cast %73 : vector<2xf32> to vector<2x1xf32>
      %75 = vector.broadcast %74 : vector<2x1xf32> to vector<2x3xf32>
      %76 = arith.divf %72, %75 : vector<2x3xf32>
      %c0_40 = arith.constant 0 : index
      %c0_41 = arith.constant 0 : index
      %77 = vector.load %arg7[%c0_40, %c0_41] : memref<2x3xf32, #tpu.memory_space<vmem>>, vector<2x3xf32>
      tpu.vector_store %arg7[%c0_40, %c0_41], %76 {strides = array<i32>} : memref<2x3xf32, #tpu.memory_space<vmem>>, vector<2x3xf32>,
    } else {
    }
    return
  }
  func.func @transform_0(%arg0: i32, %arg1: i32) -> (i32, i32, i32) {
    %c0_i32 = arith.constant 0 : i32
    %c0_i32_0 = arith.constant 0 : i32
    return %arg0, %arg1, %c0_i32 : i32, i32, i32
  }
  func.func @transform_1(%arg0: i32, %arg1: i32) -> (i32, i32, i32) {
    %c0_i32 = arith.constant 0 : i32
    %c0_i32_0 = arith.constant 0 : i32
    %c0_i32_1 = arith.constant 0 : i32
    return %arg0, %c0_i32, %c0_i32_0 : i32, i32, i32
  }
  func.func @transform_2(%arg0: i32, %arg1: i32) -> (i32, i32) {
    %c0_i32 = arith.constant 0 : i32
    %c0_i32_0 = arith.constant 0 : i32
    return %arg1, %c0_i32 : i32, i32
  }
  func.func @transform_3(%arg0: i32, %arg1: i32) -> (i32, i32) {
    %c0_i32 = arith.constant 0 : i32
    %c0_i32_0 = arith.constant 0 : i32
    %c0_i32_1 = arith.constant 0 : i32
    return %c0_i32, %c0_i32_0 : i32, i32
  }
  func.func @transform_4(%arg0: i32, %arg1: i32) -> (i32, i32) {
    %c0_i32 = arith.constant 0 : i32
    %c0_i32_0 = arith.constant 0 : i32
    return %arg0, %c0_i32 : i32, i32
  }
  func.func @transform_5(%arg0: i32, %arg1: i32) -> (i32, i32) {
    %c0_i32 = arith.constant 0 : i32
    %c0_i32_0 = arith.constant 0 : i32
    return %arg0, %c0_i32 : i32, i32
  }
}

</mosaic_0001>

<llo_original>
// kernel: tpu_custom_call.1
$region0: #{tpu_custom_call.1}
  #allocation0 [shape = 'u32[]', space=smem, size = 0x4, offset = 0x4, fixed_abs, tag = 'smem constant byte address 0x4 - core index']
  #allocation1 [shape = 'u32[144,128]{1,0:T(1,128)}', space=vmem, size = 0x12000, scoped, tag = 'internal scratch']
  #allocation2 [shape = 'f32[2,256]{1,0:T(2,128)}', space=vmem, size = 0x800, scoped, tag = 'scratch operand']
  #allocation3 [shape = 'f32[2,128]{1,0:T(2,128)}', space=vmem, size = 0x400, scoped, tag = 'scratch operand']
  #allocation4 [shape = 'f32[2,1024]{1,0:T(2,128)}', space=vmem, size = 0x2000, scoped, tag = 'scratch operand']
  %s0 = inlined_call_operand.vmem [shape: f32[2,8,32], index: 0, kind: input, shape index: {}]
  %s1 = inlined_call_operand.vmem [shape: f32[2,128,32], index: 1, kind: input, shape index: {}]
  %s2 = inlined_call_operand.hbm [shape: f32[1024,256], index: 2, kind: input, shape index: {}]
  %s3 = inlined_call_operand.vmem [shape: f32[1,256], index: 3, kind: input, shape index: {}]
  %s4 = inlined_call_operand.hbm [shape: f32[2,5], index: 4, kind: output, shape index: {0}]
  %s5 = inlined_call_operand.hbm [shape: f32[2,3], index: 5, kind: output, shape index: {1}]
  %6 = xla_tuple %s4, %s5
  %s7 = sld [smem:[#allocation0]]
  $region46: #{tpu_custom_call.1} parent=0
    _
  %s9 = ssub.s32 1, %s7
  %s10 = scalar_select 0, %s9, %s7
  $region1: #{tpu_custom_call.1} parent=0
    #allocation5 [shape = 'u8[1048576]{0}', space=vmem, size = 0x100000, scoped, tag = 'input window, operand 2, single buffered']
    #allocation6 [shape = 's32[1]{0}', space=sflag, size = 0x4, scoped, tag = 'scoped memory for tpu_custom_call.1']
    #allocation7 [shape = 's32[1]{0}', space=sflag, size = 0x4, scoped, tag = 'scoped memory for tpu_custom_call.1']
    #allocation8 [shape = 'u8[1024]{0}', space=vmem, size = 0x400, scoped, tag = 'output window, operand 0, single buffered']
    #allocation9 [shape = 'u8[1024]{0}', space=vmem, size = 0x400, scoped, tag = 'output window, operand 1, single buffered']
    #allocation10 [shape = 's32[1]{0}', space=sflag, size = 0x4, scoped, tag = 'scoped memory for tpu_custom_call.1']
    %11 = vsyncpa [#allocation6], 0
    %12 = vsyncpa [#allocation7], 0
    %13 = vsyncpa [#allocation10], 0
    // Predicated region
    $region2: #{tpu_custom_call.1} parent=1 // pred_check
      _
    $region3: #{tpu_custom_call.1} parent=1 // pred_check_branch
      %15 = sbr.rel (0) target = $region5
    $region4: #{tpu_custom_call.1} parent=1 // pred_region
      _
    $region5: #{tpu_custom_call.1} parent=1 // pred_fallthru
      _
    // Predicated region
    $region6: #{tpu_custom_call.1} parent=1 // pred_check
      _
    $region7: #{tpu_custom_call.1} parent=1 // pred_check_branch
      %17 = sbr.rel (0) target = $region9
    $region8: #{tpu_custom_call.1} parent=1 // pred_region
      _
    $region9: #{tpu_custom_call.1} parent=1 // pred_fallthru
      _
    // Predicated region
    $region10: #{tpu_custom_call.1} parent=1 // pred_check
      _
    $region11: #{tpu_custom_call.1} parent=1 // pred_check_branch
      %19 = sbr.rel (0) target = $region13
    $region12: #{tpu_custom_call.1} parent=1 // pred_region
      %s21 = ssub.s32 32768, 32768
      %22 = vsyncadd [#allocation6], %s21
      %s23 = sshll.u32 [#allocation5], 4
      %s24 = int_to_ptr.vmem [resolvable:$true] %s23
      %29 = dma.hbm_to_vmem [thread:$0]  %s2, 32768, %s24, [#allocation6], 256, 256, 16
    $region13: #{tpu_custom_call.1} parent=1 // pred_fallthru
      _
    // Predicated region
    $region14: #{tpu_custom_call.1} parent=1 // pred_check
      _
    $region15: #{tpu_custom_call.1} parent=1 // pred_check_branch
      %31 = sbr.rel (0) target = $region17
    $region16: #{tpu_custom_call.1} parent=1 // pred_region
      _
    $region17: #{tpu_custom_call.1} parent=1 // pred_fallthru
      _
    // Predicated region
    $region18: #{tpu_custom_call.1} parent=1 // pred_check
      _
    $region19: #{tpu_custom_call.1} parent=1 // pred_check_branch
      %33 = sbr.rel (0) target = $region21
    $region20: #{tpu_custom_call.1} parent=1 // pred_region
      %34 = dma.done [#allocation6], 32768
    $region21: #{tpu_custom_call.1} parent=1 // pred_fallthru
      _
    %p35 = scmp.eq.s32.totalorder 0, 0
    // Predicated region
    $region22: #{tpu_custom_call.1} parent=1 // pred_check
      %p36 = pneg %p35
    $region23: #{tpu_custom_call.1} parent=1 // pred_check_branch
      %38 = sbr.rel (%p36) target = $region25
    $region24: #{tpu_custom_call.1} parent=1 // pred_region
      %39 = vst [vmem:[#allocation2] sm:$0xf] 0.0
      %v40 = vld [vmem:[%s1] sm:$0xff]
      %v41 = vld [vmem:[%s1 + $0x8] sm:$0xff]
      %v42 = vld [vmem:[%s1 + $0x10] sm:$0xff]
      %v43 = vld [vmem:[%s1 + $0x18] sm:$0xff]
      %v44 = vld [vmem:[%s1 + $0x20] sm:$0xff]
      %v45 = vld [vmem:[%s1 + $0x28] sm:$0xff]
      %v46 = vld [vmem:[%s1 + $0x30] sm:$0xff]
      %v47 = vld [vmem:[%s1 + $0x38] sm:$0xff]
      %v48 = vld [vmem:[%s1 + $0x40] sm:$0xff]
      %v49 = vld [vmem:[%s1 + $0x48] sm:$0xff]
      %v50 = vld [vmem:[%s1 + $0x50] sm:$0xff]
      %v51 = vld [vmem:[%s1 + $0x58] sm:$0xff]
      %v52 = vld [vmem:[%s1 + $0x60] sm:$0xff]
      %v53 = vld [vmem:[%s1 + $0x68] sm:$0xff]
      %v54 = vld [vmem:[%s1 + $0x70] sm:$0xff]
      %v55 = vld [vmem:[%s1 + $0x78] sm:$0xff]
      %v56 = vld [vmem:[%s1 + $0x80] sm:$0xff]
      %v57 = vld [vmem:[%s1 + $0x88] sm:$0xff]
      %v58 = vld [vmem:[%s1 + $0x90] sm:$0xff]
      %v59 = vld [vmem:[%s1 + $0x98] sm:$0xff]
      %v60 = vld [vmem:[%s1 + $0xa0] sm:$0xff]
      %v61 = vld [vmem:[%s1 + $0xa8] sm:$0xff]
      %v62 = vld [vmem:[%s1 + $0xb0] sm:$0xff]
      %v63 = vld [vmem:[%s1 + $0xb8] sm:$0xff]
      %v64 = vld [vmem:[%s1 + $0xc0] sm:$0xff]
      %v65 = vld [vmem:[%s1 + $0xc8] sm:$0xff]
      %v66 = vld [vmem:[%s1 + $0xd0] sm:$0xff]
      %v67 = vld [vmem:[%s1 + $0xd8] sm:$0xff]
      %v68 = vld [vmem:[%s1 + $0xe0] sm:$0xff]
      %v69 = vld [vmem:[%s1 + $0xe8] sm:$0xff]
      %v70 = vld [vmem:[%s1 + $0xf0] sm:$0xff]
      %v71 = vld [vmem:[%s1 + $0xf8] sm:$0xff]
      %v72 = vmul.f32 %v40, %v40
      %v73 = vmul.f32 %v41, %v41
      %v74 = vmul.f32 %v42, %v42
      %v75 = vmul.f32 %v43, %v43
      %v76 = vmul.f32 %v44, %v44
      %v77 = vmul.f32 %v45, %v45
      %v78 = vmul.f32 %v46, %v46
      %v79 = vmul.f32 %v47, %v47
      %v80 = vmul.f32 %v48, %v48
      %v81 = vmul.f32 %v49, %v49
      %v82 = vmul.f32 %v50, %v50
      %v83 = vmul.f32 %v51, %v51
      %v84 = vmul.f32 %v52, %v52
      %v85 = vmul.f32 %v53, %v53
      %v86 = vmul.f32 %v54, %v54
      %v87 = vmul.f32 %v55, %v55
      %v88 = vmul.f32 %v56, %v56
      %v89 = vmul.f32 %v57, %v57
      %v90 = vmul.f32 %v58, %v58
      %v91 = vmul.f32 %v59, %v59
      %v92 = vmul.f32 %v60, %v60
      %v93 = vmul.f32 %v61, %v61
      %v94 = vmul.f32 %v62, %v62
      %v95 = vmul.f32 %v63, %v63
      %v96 = vmul.f32 %v64, %v64
      %v97 = vmul.f32 %v65, %v65
      %v98 = vmul.f32 %v66, %v66
      %v99 = vmul.f32 %v67, %v67
      %v100 = vmul.f32 %v68, %v68
      %v101 = vmul.f32 %v69, %v69
      %v102 = vmul.f32 %v70, %v70
      %v103 = vmul.f32 %v71, %v71
      %vm104 = vcmask 261120
      %v105 = vsel %vm104, %v72, 0.0
      %106 = vadd.xlane.f32.xlu0 %v105
      %v107 = vpop.xlane.xlu0 %106
      %v108 = vsel %vm104, %v73, 0.0
      %109 = vadd.xlane.f32.xlu0 %v108
      %v110 = vpop.xlane.xlu0 %109
      %v111 = vsel %vm104, %v74, 0.0
      %112 = vadd.xlane.f32.xlu0 %v111
      %v113 = vpop.xlane.xlu0 %112
      %v114 = vsel %vm104, %v75, 0.0
      %115 = vadd.xlane.f32.xlu0 %v114
      %v116 = vpop.xlane.xlu0 %115
      %v117 = vsel %vm104, %v76, 0.0
      %118 = vadd.xlane.f32.xlu0 %v117
      %v119 = vpop.xlane.xlu0 %118
      %v120 = vsel %vm104, %v77, 0.0
      %121 = vadd.xlane.f32.xlu0 %v120
      %v122 = vpop.xlane.xlu0 %121
      %v123 = vsel %vm104, %v78, 0.0
      %124 = vadd.xlane.f32.xlu0 %v123
      %v125 = vpop.xlane.xlu0 %124
      %v126 = vsel %vm104, %v79, 0.0
      %127 = vadd.xlane.f32.xlu0 %v126
      %v128 = vpop.xlane.xlu0 %127
      %v129 = vsel %vm104, %v80, 0.0
      %130 = vadd.xlane.f32.xlu0 %v129
      %v131 = vpop.xlane.xlu0 %130
      %v132 = vsel %vm104, %v81, 0.0
      %133 = vadd.xlane.f32.xlu0 %v132
      %v134 = vpop.xlane.xlu0 %133
      %v135 = vsel %vm104, %v82, 0.0
      %136 = vadd.xlane.f32.xlu0 %v135
      %v137 = vpop.xlane.xlu0 %136
      %v138 = vsel %vm104, %v83, 0.0
      %139 = vadd.xlane.f32.xlu0 %v138
      %v140 = vpop.xlane.xlu0 %139
      %v141 = vsel %vm104, %v84, 0.0
      %142 = vadd.xlane.f32.xlu0 %v141
      %v143 = vpop.xlane.xlu0 %142
      %v144 = vsel %vm104, %v85, 0.0
      %145 = vadd.xlane.f32.xlu0 %v144
      %v146 = vpop.xlane.xlu0 %145
      %v147 = vsel %vm104, %v86, 0.0
      %148 = vadd.xlane.f32.xlu0 %v147
      %v149 = vpop.xlane.xlu0 %148
      %v150 = vsel %vm104, %v87, 0.0
      %151 = vadd.xlane.f32.xlu0 %v150
      %v152 = vpop.xlane.xlu0 %151
      %v153 = vsel %vm104, %v88, 0.0
      %154 = vadd.xlane.f32.xlu0 %v153
      %v155 = vpop.xlane.xlu0 %154
      %v156 = vsel %vm104, %v89, 0.0
      %157 = vadd.xlane.f32.xlu0 %v156
      %v158 = vpop.xlane.xlu0 %157
      %v159 = vsel %vm104, %v90, 0.0
      %160 = vadd.xlane.f32.xlu0 %v159
      %v161 = vpop.xlane.xlu0 %160
      %v162 = vsel %vm104, %v91, 0.0
      %163 = vadd.xlane.f32.xlu0 %v162
      %v164 = vpop.xlane.xlu0 %163
      %v165 = vsel %vm104, %v92, 0.0
      %166 = vadd.xlane.f32.xlu0 %v165
      %v167 = vpop.xlane.xlu0 %166
      %v168 = vsel %vm104, %v93, 0.0
      %169 = vadd.xlane.f32.xlu0 %v168
      %v170 = vpop.xlane.xlu0 %169
      %v171 = vsel %vm104, %v94, 0.0
      %172 = vadd.xlane.f32.xlu0 %v171
      %v173 = vpop.xlane.xlu0 %172
      %v174 = vsel %vm104, %v95, 0.0
      %175 = vadd.xlane.f32.xlu0 %v174
      %v176 = vpop.xlane.xlu0 %175
      %v177 = vsel %vm104, %v96, 0.0
      %178 = vadd.xlane.f32.xlu0 %v177
      %v179 = vpop.xlane.xlu0 %178
      %v180 = vsel %vm104, %v97, 0.0
      %181 = vadd.xlane.f32.xlu0 %v180
      %v182 = vpop.xlane.xlu0 %181
      %v183 = vsel %vm104, %v98, 0.0
      %184 = vadd.xlane.f32.xlu0 %v183
      %v185 = vpop.xlane.xlu0 %184
      %v186 = vsel %vm104, %v99, 0.0
      %187 = vadd.xlane.f32.xlu0 %v186
      %v188 = vpop.xlane.xlu0 %187
      %v189 = vsel %vm104, %v100, 0.0
      %190 = vadd.xlane.f32.xlu0 %v189
      %v191 = vpop.xlane.xlu0 %190
      %v192 = vsel %vm104, %v101, 0.0
      %193 = vadd.xlane.f32.xlu0 %v192
      %v194 = vpop.xlane.xlu0 %193
      %v195 = vsel %vm104, %v102, 0.0
      %196 = vadd.xlane.f32.xlu0 %v195
      %v197 = vpop.xlane.xlu0 %196
      %v198 = vsel %vm104, %v103, 0.0
      %199 = vadd.xlane.f32.xlu0 %v198
      %v200 = vpop.xlane.xlu0 %199
      %v201 = vrsqrt.pop %v107
      %v202 = vmul.f32 %v107, %v201
      %vm203 = vcmp.eq.f32.partialorder %v107, inf
      %v204 = vsel %vm203, %v107, %v202
      %vm205 = vcmp.eq.f32.partialorder %v107, 0.0
      %v206 = vand.u32 %v107, 2147483648
      %v207 = vsel %vm205, %v206, %v204
      %v208 = vrsqrt.pop %v110
      %v209 = vmul.f32 %v110, %v208
      %vm210 = vcmp.eq.f32.partialorder %v110, inf
      %v211 = vsel %vm210, %v110, %v209
      %vm212 = vcmp.eq.f32.partialorder %v110, 0.0
      %v213 = vand.u32 %v110, 2147483648
      %v214 = vsel %vm212, %v213, %v211
      %v215 = vrsqrt.pop %v113
      %v216 = vmul.f32 %v113, %v215
      %vm217 = vcmp.eq.f32.partialorder %v113, inf
      %v218 = vsel %vm217, %v113, %v216
      %vm219 = vcmp.eq.f32.partialorder %v113, 0.0
      %v220 = vand.u32 %v113, 2147483648
      %v221 = vsel %vm219, %v220, %v218
      %v222 = vrsqrt.pop %v116
      %v223 = vmul.f32 %v116, %v222
      %vm224 = vcmp.eq.f32.partialorder %v116, inf
      %v225 = vsel %vm224, %v116, %v223
      %vm226 = vcmp.eq.f32.partialorder %v116, 0.0
      %v227 = vand.u32 %v116, 2147483648
      %v228 = vsel %vm226, %v227, %v225
      %v229 = vrsqrt.pop %v119
      %v230 = vmul.f32 %v119, %v229
      %vm231 = vcmp.eq.f32.partialorder %v119, inf
      %v232 = vsel %vm231, %v119, %v230
      %vm233 = vcmp.eq.f32.partialorder %v119, 0.0
      %v234 = vand.u32 %v119, 2147483648
      %v235 = vsel %vm233, %v234, %v232
      %v236 = vrsqrt.pop %v122
      %v237 = vmul.f32 %v122, %v236
      %vm238 = vcmp.eq.f32.partialorder %v122, inf
      %v239 = vsel %vm238, %v122, %v237
      %vm240 = vcmp.eq.f32.partialorder %v122, 0.0
      %v241 = vand.u32 %v122, 2147483648
      %v242 = vsel %vm240, %v241, %v239
      %v243 = vrsqrt.pop %v125
      %v244 = vmul.f32 %v125, %v243
      %vm245 = vcmp.eq.f32.partialorder %v125, inf
      %v246 = vsel %vm245, %v125, %v244
      %vm247 = vcmp.eq.f32.partialorder %v125, 0.0
      %v248 = vand.u32 %v125, 2147483648
      %v249 = vsel %vm247, %v248, %v246
      %v250 = vrsqrt.pop %v128
      %v251 = vmul.f32 %v128, %v250
      %vm252 = vcmp.eq.f32.partialorder %v128, inf
      %v253 = vsel %vm252, %v128, %v251
      %vm254 = vcmp.eq.f32.partialorder %v128, 0.0
      %v255 = vand.u32 %v128, 2147483648
      %v256 = vsel %vm254, %v255, %v253
      %v257 = vrsqrt.pop %v131
      %v258 = vmul.f32 %v131, %v257
      %vm259 = vcmp.eq.f32.partialorder %v131, inf
      %v260 = vsel %vm259, %v131, %v258
      %vm261 = vcmp.eq.f32.partialorder %v131, 0.0
      %v262 = vand.u32 %v131, 2147483648
      %v263 = vsel %vm261, %v262, %v260
      %v264 = vrsqrt.pop %v134
      %v265 = vmul.f32 %v134, %v264
      %vm266 = vcmp.eq.f32.partialorder %v134, inf
      %v267 = vsel %vm266, %v134, %v265
      %vm268 = vcmp.eq.f32.partialorder %v134, 0.0
      %v269 = vand.u32 %v134, 2147483648
      %v270 = vsel %vm268, %v269, %v267
      %v271 = vrsqrt.pop %v137
      %v272 = vmul.f32 %v137, %v271
      %vm273 = vcmp.eq.f32.partialorder %v137, inf
      %v274 = vsel %vm273, %v137, %v272
      %vm275 = vcmp.eq.f32.partialorder %v137, 0.0
      %v276 = vand.u32 %v137, 2147483648
      %v277 = vsel %vm275, %v276, %v274
      %v278 = vrsqrt.pop %v140
      %v279 = vmul.f32 %v140, %v278
      %vm280 = vcmp.eq.f32.partialorder %v140, inf
      %v281 = vsel %vm280, %v140, %v279
      %vm282 = vcmp.eq.f32.partialorder %v140, 0.0
      %v283 = vand.u32 %v140, 2147483648
      %v284 = vsel %vm282, %v283, %v281
      %v285 = vrsqrt.pop %v143
      %v286 = vmul.f32 %v143, %v285
      %vm287 = vcmp.eq.f32.partialorder %v143, inf
      %v288 = vsel %vm287, %v143, %v286
      %vm289 = vcmp.eq.f32.partialorder %v143, 0.0
      %v290 = vand.u32 %v143, 2147483648
      %v291 = vsel %vm289, %v290, %v288
      %v292 = vrsqrt.pop %v146
      %v293 = vmul.f32 %v146, %v292
      %vm294 = vcmp.eq.f32.partialorder %v146, inf
      %v295 = vsel %vm294, %v146, %v293
      %vm296 = vcmp.eq.f32.partialorder %v146, 0.0
      %v297 = vand.u32 %v146, 2147483648
      %v298 = vsel %vm296, %v297, %v295
      %v299 = vrsqrt.pop %v149
      %v300 = vmul.f32 %v149, %v299
      %vm301 = vcmp.eq.f32.partialorder %v149, inf
      %v302 = vsel %vm301, %v149, %v300
      %vm303 = vcmp.eq.f32.partialorder %v149, 0.0
      %v304 = vand.u32 %v149, 2147483648
      %v305 = vsel %vm303, %v304, %v302
      %v306 = vrsqrt.pop %v152
      %v307 = vmul.f32 %v152, %v306
      %vm308 = vcmp.eq.f32.partialorder %v152, inf
      %v309 = vsel %vm308, %v152, %v307
      %vm310 = vcmp.eq.f32.partialorder %v152, 0.0
      %v311 = vand.u32 %v152, 2147483648
      %v312 = vsel %vm310, %v311, %v309
      %v313 = vrsqrt.pop %v155
      %v314 = vmul.f32 %v155, %v313
      %vm315 = vcmp.eq.f32.partialorder %v155, inf
      %v316 = vsel %vm315, %v155, %v314
      %vm317 = vcmp.eq.f32.partialorder %v155, 0.0
      %v318 = vand.u32 %v155, 2147483648
      %v319 = vsel %vm317, %v318, %v316
      %v320 = vrsqrt.pop %v158
      %v321 = vmul.f32 %v158, %v320
      %vm322 = vcmp.eq.f32.partialorder %v158, inf
      %v323 = vsel %vm322, %v158, %v321
      %vm324 = vcmp.eq.f32.partialorder %v158, 0.0
      %v325 = vand.u32 %v158, 2147483648
      %v326 = vsel %vm324, %v325, %v323
      %v327 = vrsqrt.pop %v161
      %v328 = vmul.f32 %v161, %v327
      %vm329 = vcmp.eq.f32.partialorder %v161, inf
      %v330 = vsel %vm329, %v161, %v328
      %vm331 = vcmp.eq.f32.partialorder %v161, 0.0
      %v332 = vand.u32 %v161, 2147483648
      %v333 = vsel %vm331, %v332, %v330
      %v334 = vrsqrt.pop %v164
      %v335 = vmul.f32 %v164, %v334
      %vm336 = vcmp.eq.f32.partialorder %v164, inf
      %v337 = vsel %vm336, %v164, %v335
      %vm338 = vcmp.eq.f32.partialorder %v164, 0.0
      %v339 = vand.u32 %v164, 2147483648
      %v340 = vsel %vm338, %v339, %v337
      %v341 = vrsqrt.pop %v167
      %v342 = vmul.f32 %v167, %v341
      %vm343 = vcmp.eq.f32.partialorder %v167, inf
      %v344 = vsel %vm343, %v167, %v342
      %vm345 = vcmp.eq.f32.partialorder %v167, 0.0
      %v346 = vand.u32 %v167, 2147483648
      %v347 = vsel %vm345, %v346, %v344
      %v348 = vrsqrt.pop %v170
      %v349 = vmul.f32 %v170, %v348
      %vm350 = vcmp.eq.f32.partialorder %v170, inf
      %v351 = vsel %vm350, %v170, %v349
      %vm352 = vcmp.eq.f32.partialorder %v170, 0.0
      %v353 = vand.u32 %v170, 2147483648
      %v354 = vsel %vm352, %v353, %v351
      %v355 = vrsqrt.pop %v173
      %v356 = vmul.f32 %v173, %v355
      %vm357 = vcmp.eq.f32.partialorder %v173, inf
      %v358 = vsel %vm357, %v173, %v356
      %vm359 = vcmp.eq.f32.partialorder %v173, 0.0
      %v360 = vand.u32 %v173, 2147483648
      %v361 = vsel %vm359, %v360, %v358
      %v362 = vrsqrt.pop %v176
      %v363 = vmul.f32 %v176, %v362
      %vm364 = vcmp.eq.f32.partialorder %v176, inf
      %v365 = vsel %vm364, %v176, %v363
      %vm366 = vcmp.eq.f32.partialorder %v176, 0.0
      %v367 = vand.u32 %v176, 2147483648
      %v368 = vsel %vm366, %v367, %v365
      %v369 = vrsqrt.pop %v179
      %v370 = vmul.f32 %v179, %v369
      %vm371 = vcmp.eq.f32.partialorder %v179, inf
      %v372 = vsel %vm371, %v179, %v370
      %vm373 = vcmp.eq.f32.partialorder %v179, 0.0
      %v374 = vand.u32 %v179, 2147483648
      %v375 = vsel %vm373, %v374, %v372
      %v376 = vrsqrt.pop %v182
      %v377 = vmul.f32 %v182, %v376
      %vm378 = vcmp.eq.f32.partialorder %v182, inf
      %v379 = vsel %vm378, %v182, %v377
      %vm380 = vcmp.eq.f32.partialorder %v182, 0.0
      %v381 = vand.u32 %v182, 2147483648
      %v382 = vsel %vm380, %v381, %v379
      %v383 = vrsqrt.pop %v185
      %v384 = vmul.f32 %v185, %v383
      %vm385 = vcmp.eq.f32.partialorder %v185, inf
      %v386 = vsel %vm385, %v185, %v384
      %vm387 = vcmp.eq.f32.partialorder %v185, 0.0
      %v388 = vand.u32 %v185, 2147483648
      %v389 = vsel %vm387, %v388, %v386
      %v390 = vrsqrt.pop %v188
      %v391 = vmul.f32 %v188, %v390
      %vm392 = vcmp.eq.f32.partialorder %v188, inf
      %v393 = vsel %vm392, %v188, %v391
      %vm394 = vcmp.eq.f32.partialorder %v188, 0.0
      %v395 = vand.u32 %v188, 2147483648
      %v396 = vsel %vm394, %v395, %v393
      %v397 = vrsqrt.pop %v191
      %v398 = vmul.f32 %v191, %v397
      %vm399 = vcmp.eq.f32.partialorder %v191, inf
      %v400 = vsel %vm399, %v191, %v398
      %vm401 = vcmp.eq.f32.partialorder %v191, 0.0
      %v402 = vand.u32 %v191, 2147483648
      %v403 = vsel %vm401, %v402, %v400
      %v404 = vrsqrt.pop %v194
      %v405 = vmul.f32 %v194, %v404
      %vm406 = vcmp.eq.f32.partialorder %v194, inf
      %v407 = vsel %vm406, %v194, %v405
      %vm408 = vcmp.eq.f32.partialorder %v194, 0.0
      %v409 = vand.u32 %v194, 2147483648
      %v410 = vsel %vm408, %v409, %v407
      %v411 = vrsqrt.pop %v197
      %v412 = vmul.f32 %v197, %v411
      %vm413 = vcmp.eq.f32.partialorder %v197, inf
      %v414 = vsel %vm413, %v197, %v412
      %vm415 = vcmp.eq.f32.partialorder %v197, 0.0
      %v416 = vand.u32 %v197, 2147483648
      %v417 = vsel %vm415, %v416, %v414
      %v418 = vrsqrt.pop %v200
      %v419 = vmul.f32 %v200, %v418
      %vm420 = vcmp.eq.f32.partialorder %v200, inf
      %v421 = vsel %vm420, %v200, %v419
      %vm422 = vcmp.eq.f32.partialorder %v200, 0.0
      %v423 = vand.u32 %v200, 2147483648
      %v424 = vsel %vm422, %v423, %v421
      %v457 = vlaneseq
      %v458 = vand.u32 %v457, 127
      %v459 = vlaneseq
      %v460 = vshrl.u32 %v459, 7
      %v461 = vsub.s32 %v458, %v460
      %v462 = vrot.slane %v207, %v461
      %v463 = vadd.s32 %v458, 4294967288
      %v464 = vlaneseq
      %v465 = vshrl.u32 %v464, 7
      %v466 = vsub.s32 %v463, %v465
      %v467 = vrot.slane %v214, %v466
      %vm468 = vcmask 130112
      %v469 = vsel %vm468, %v467, %v462
      %v470 = vadd.s32 %v458, 4294967280
      %v471 = vlaneseq
      %v472 = vshrl.u32 %v471, 7
      %v473 = vsub.s32 %v470, %v472
      %v474 = vrot.slane %v221, %v473
      %vm475 = vcmask 195712
      %v476 = vsel %vm475, %v474, %v469
      %v477 = vadd.s32 %v458, 4294967272
      %v478 = vlaneseq
      %v479 = vshrl.u32 %v478, 7
      %v480 = vsub.s32 %v477, %v479
      %v481 = vrot.slane %v228, %v480
      %vm482 = vcmask 261312
      %v483 = vsel %vm482, %v481, %v476
      %v484 = vadd.s32 %v458, 4294967264
      %v485 = vlaneseq
      %v486 = vshrl.u32 %v485, 7
      %v487 = vsub.s32 %v484, %v486
      %v488 = vrot.slane %v235, %v487
      %vm489 = vcmask 326912
      %v490 = vsel %vm489, %v488, %v483
      %v491 = vadd.s32 %v458, 4294967256
      %v492 = vlaneseq
      %v493 = vshrl.u32 %v492, 7
      %v494 = vsub.s32 %v491, %v493
      %v495 = vrot.slane %v242, %v494
      %vm496 = vcmask 392512
      %v497 = vsel %vm496, %v495, %v490
      %v498 = vadd.s32 %v458, 4294967248
      %v499 = vlaneseq
      %v500 = vshrl.u32 %v499, 7
      %v501 = vsub.s32 %v498, %v500
      %v502 = vrot.slane %v249, %v501
      %vm503 = vcmask 458112
      %v504 = vsel %vm503, %v502, %v497
      %v505 = vadd.s32 %v458, 4294967240
      %v506 = vlaneseq
      %v507 = vshrl.u32 %v506, 7
      %v508 = vsub.s32 %v505, %v507
      %v509 = vrot.slane %v256, %v508
      %vm510 = vcmask 523712
      %v511 = vsel %vm510, %v509, %v504
      %v512 = vadd.s32 %v458, 4294967232
      %v513 = vlaneseq
      %v514 = vshrl.u32 %v513, 7
      %v515 = vsub.s32 %v512, %v514
      %v516 = vrot.slane %v263, %v515
      %vm517 = vcmask 589312
      %v518 = vsel %vm517, %v516, %v511
      %v519 = vadd.s32 %v458, 4294967224
      %v520 = vlaneseq
      %v521 = vshrl.u32 %v520, 7
      %v522 = vsub.s32 %v519, %v521
      %v523 = vrot.slane %v270, %v522
      %vm524 = vcmask 654912
      %v525 = vsel %vm524, %v523, %v518
      %v526 = vadd.s32 %v458, 4294967216
      %v527 = vlaneseq
      %v528 = vshrl.u32 %v527, 7
      %v529 = vsub.s32 %v526, %v528
      %v530 = vrot.slane %v277, %v529
      %vm531 = vcmask 720512
      %v532 = vsel %vm531, %v530, %v525
      %v533 = vadd.s32 %v458, 4294967208
      %v534 = vlaneseq
      %v535 = vshrl.u32 %v534, 7
      %v536 = vsub.s32 %v533, %v535
      %v537 = vrot.slane %v284, %v536
      %vm538 = vcmask 786112
      %v539 = vsel %vm538, %v537, %v532
      %v540 = vadd.s32 %v458, 4294967200
      %v541 = vlaneseq
      %v542 = vshrl.u32 %v541, 7
      %v543 = vsub.s32 %v540, %v542
      %v544 = vrot.slane %v291, %v543
      %vm545 = vcmask 851712
      %v546 = vsel %vm545, %v544, %v539
      %v547 = vadd.s32 %v458, 4294967192
      %v548 = vlaneseq
      %v549 = vshrl.u32 %v548, 7
      %v550 = vsub.s32 %v547, %v549
      %v551 = vrot.slane %v298, %v550
      %vm552 = vcmask 917312
      %v553 = vsel %vm552, %v551, %v546
      %v554 = vadd.s32 %v458, 4294967184
      %v555 = vlaneseq
      %v556 = vshrl.u32 %v555, 7
      %v557 = vsub.s32 %v554, %v556
      %v558 = vrot.slane %v305, %v557
      %vm559 = vcmask 982912
      %v560 = vsel %vm559, %v558, %v553
      %v561 = vadd.s32 %v458, 4294967176
      %v562 = vlaneseq
      %v563 = vshrl.u32 %v562, 7
      %v564 = vsub.s32 %v561, %v563
      %v565 = vrot.slane %v312, %v564
      %vm566 = vcmask 1048512
      %v567 = vsel %vm566, %v565, %v560
      %v568 = vlaneseq
      %v569 = vshrl.u32 %v568, 7
      %v570 = vsub.s32 %v458, %v569
      %v571 = vrot.slane %v319, %v570
      %v572 = vlaneseq
      %v573 = vshrl.u32 %v572, 7
      %v574 = vsub.s32 %v463, %v573
      %v575 = vrot.slane %v326, %v574
      %v576 = vsel %vm468, %v575, %v571
      %v577 = vlaneseq
      %v578 = vshrl.u32 %v577, 7
      %v579 = vsub.s32 %v470, %v578
      %v580 = vrot.slane %v333, %v579
      %v581 = vsel %vm475, %v580, %v576
      %v582 = vlaneseq
      %v583 = vshrl.u32 %v582, 7
      %v584 = vsub.s32 %v477, %v583
      %v585 = vrot.slane %v340, %v584
      %v586 = vsel %vm482, %v585, %v581
      %v587 = vlaneseq
      %v588 = vshrl.u32 %v587, 7
      %v589 = vsub.s32 %v484, %v588
      %v590 = vrot.slane %v347, %v589
      %v591 = vsel %vm489, %v590, %v586
      %v592 = vlaneseq
      %v593 = vshrl.u32 %v592, 7
      %v594 = vsub.s32 %v491, %v593
      %v595 = vrot.slane %v354, %v594
      %v596 = vsel %vm496, %v595, %v591
      %v597 = vlaneseq
      %v598 = vshrl.u32 %v597, 7
      %v599 = vsub.s32 %v498, %v598
      %v600 = vrot.slane %v361, %v599
      %v601 = vsel %vm503, %v600, %v596
      %v602 = vlaneseq
      %v603 = vshrl.u32 %v602, 7
      %v604 = vsub.s32 %v505, %v603
      %v605 = vrot.slane %v368, %v604
      %v606 = vsel %vm510, %v605, %v601
      %v607 = vlaneseq
      %v608 = vshrl.u32 %v607, 7
      %v609 = vsub.s32 %v512, %v608
      %v610 = vrot.slane %v375, %v609
      %v611 = vsel %vm517, %v610, %v606
      %v612 = vlaneseq
      %v613 = vshrl.u32 %v612, 7
      %v614 = vsub.s32 %v519, %v613
      %v615 = vrot.slane %v382, %v614
      %v616 = vsel %vm524, %v615, %v611
      %v617 = vlaneseq
      %v618 = vshrl.u32 %v617, 7
      %v619 = vsub.s32 %v526, %v618
      %v620 = vrot.slane %v389, %v619
      %v621 = vsel %vm531, %v620, %v616
      %v622 = vlaneseq
      %v623 = vshrl.u32 %v622, 7
      %v624 = vsub.s32 %v533, %v623
      %v625 = vrot.slane %v396, %v624
      %v626 = vsel %vm538, %v625, %v621
      %v627 = vlaneseq
      %v628 = vshrl.u32 %v627, 7
      %v629 = vsub.s32 %v540, %v628
      %v630 = vrot.slane %v403, %v629
      %v631 = vsel %vm545, %v630, %v626
      %v632 = vlaneseq
      %v633 = vshrl.u32 %v632, 7
      %v634 = vsub.s32 %v547, %v633
      %v635 = vrot.slane %v410, %v634
      %v636 = vsel %vm552, %v635, %v631
      %v637 = vlaneseq
      %v638 = vshrl.u32 %v637, 7
      %v639 = vsub.s32 %v554, %v638
      %v640 = vrot.slane %v417, %v639
      %v641 = vsel %vm559, %v640, %v636
      %v642 = vlaneseq
      %v643 = vshrl.u32 %v642, 7
      %v644 = vsub.s32 %v561, %v643
      %v645 = vrot.slane %v424, %v644
      %v646 = vsel %vm566, %v645, %v641
      %vm647 = vcmask 1041409
      %v648 = vsel %vm647, %v646, %v567
      %650 = vst [vmem:[#allocation3] sm:$0x3] %v648
    $region25: #{tpu_custom_call.1} parent=1 // pred_fallthru
      _
    %v651 = vld [vmem:[%s0] sm:$0xff]
    %v652 = vld [vmem:[%s0 + $0x8] sm:$0xff]
    %v653 = vld [vmem:[%s1] sm:$0xff]
    %v654 = vld [vmem:[%s1 + $0x8] sm:$0xff]
    %v655 = vld [vmem:[%s1 + $0x10] sm:$0xff]
    %v656 = vld [vmem:[%s1 + $0x18] sm:$0xff]
    %v657 = vld [vmem:[%s1 + $0x20] sm:$0xff]
    %v658 = vld [vmem:[%s1 + $0x28] sm:$0xff]
    %v659 = vld [vmem:[%s1 + $0x30] sm:$0xff]
    %v660 = vld [vmem:[%s1 + $0x38] sm:$0xff]
    %v661 = vld [vmem:[%s1 + $0x40] sm:$0xff]
    %v662 = vld [vmem:[%s1 + $0x48] sm:$0xff]
    %v663 = vld [vmem:[%s1 + $0x50] sm:$0xff]
    %v664 = vld [vmem:[%s1 + $0x58] sm:$0xff]
    %v665 = vld [vmem:[%s1 + $0x60] sm:$0xff]
    %v666 = vld [vmem:[%s1 + $0x68] sm:$0xff]
    %v667 = vld [vmem:[%s1 + $0x70] sm:$0xff]
    %v668 = vld [vmem:[%s1 + $0x78] sm:$0xff]
    %v669 = vld [vmem:[%s1 + $0x80] sm:$0xff]
    %v670 = vld [vmem:[%s1 + $0x88] sm:$0xff]
    %v671 = vld [vmem:[%s1 + $0x90] sm:$0xff]
    %v672 = vld [vmem:[%s1 + $0x98] sm:$0xff]
    %v673 = vld [vmem:[%s1 + $0xa0] sm:$0xff]
    %v674 = vld [vmem:[%s1 + $0xa8] sm:$0xff]
    %v675 = vld [vmem:[%s1 + $0xb0] sm:$0xff]
    %v676 = vld [vmem:[%s1 + $0xb8] sm:$0xff]
    %v677 = vld [vmem:[%s1 + $0xc0] sm:$0xff]
    %v678 = vld [vmem:[%s1 + $0xc8] sm:$0xff]
    %v679 = vld [vmem:[%s1 + $0xd0] sm:$0xff]
    %v680 = vld [vmem:[%s1 + $0xd8] sm:$0xff]
    %v681 = vld [vmem:[%s1 + $0xe0] sm:$0xff]
    %v682 = vld [vmem:[%s1 + $0xe8] sm:$0xff]
    %v683 = vld [vmem:[%s1 + $0xf0] sm:$0xff]
    %v684 = vld [vmem:[%s1 + $0xf8] sm:$0xff]
    %vm685 = vcmask 261120
    %v687 = vsel %vm685, %v651, 0
    %v690 = vsel %vm685, %v653, 0
    %v693 = vsel %vm685, %v654, 0
    %v696 = vsel %vm685, %v655, 0
    %v699 = vsel %vm685, %v656, 0
    %v702 = vsel %vm685, %v657, 0
    %v705 = vsel %vm685, %v658, 0
    %v708 = vsel %vm685, %v659, 0
    %v711 = vsel %vm685, %v660, 0
    %v714 = vsel %vm685, %v661, 0
    %v717 = vsel %vm685, %v662, 0
    %v720 = vsel %vm685, %v663, 0
    %v723 = vsel %vm685, %v664, 0
    %v726 = vsel %vm685, %v665, 0
    %v729 = vsel %vm685, %v666, 0
    %v732 = vsel %vm685, %v667, 0
    %v735 = vsel %vm685, %v668, 0
    %737 = vmatprep.subr.mxu0 0.0
    %738 = vmatpush1.xpose.msra.mxu0 %v690
    %739 = vmatprep.subr.mxu0 0.0
    %740 = vmatpush1.xpose.msra.mxu0 %v693
    %741 = vmatprep.subr.mxu0 0.0
    %742 = vmatpush1.xpose.msra.mxu0 %v696
    %743 = vmatprep.subr.mxu0 0.0
    %744 = vmatpush1.xpose.msra.mxu0 %v699
    %745 = vmatprep.subr.mxu0 0.0
    %746 = vmatpush1.xpose.msra.mxu0 %v702
    %747 = vmatprep.subr.mxu0 0.0
    %748 = vmatpush1.xpose.msra.mxu0 %v705
    %749 = vmatprep.subr.mxu0 0.0
    %750 = vmatpush1.xpose.msra.mxu0 %v708
    %751 = vmatprep.subr.mxu0 0.0
    %752 = vmatpush1.xpose.msra.mxu0 %v711
    %753 = vmatprep.subr.mxu0 0.0
    %754 = vmatpush1.xpose.msra.mxu0 %v714
    %755 = vmatprep.subr.mxu0 0.0
    %756 = vmatpush1.xpose.msra.mxu0 %v717
    %757 = vmatprep.subr.mxu0 0.0
    %758 = vmatpush1.xpose.msra.mxu0 %v720
    %759 = vmatprep.subr.mxu0 0.0
    %760 = vmatpush1.xpose.msra.mxu0 %v723
    %761 = vmatprep.subr.mxu0 0.0
    %762 = vmatpush1.xpose.msra.mxu0 %v726
    %763 = vmatprep.subr.mxu0 0.0
    %764 = vmatpush1.xpose.msra.mxu0 %v729
    %765 = vmatprep.subr.mxu0 0.0
    %766 = vmatpush1.xpose.msra.mxu0 %v732
    %767 = vmatprep.subr.mxu0 0.0
    %768 = vmatpush1.xpose.msra.mxu0 %v735
    %769 = vmatprep.subr.mxu0 0.0
    %770 = vmatpush1.xpose.msra.mxu0 0.0
    %771 = vmatprep.subr.mxu0 0.0
    %772 = vmatpush1.xpose.msra.mxu0 0.0
    %773 = vmatprep.subr.mxu0 0.0
    %774 = vmatpush1.xpose.msra.mxu0 0.0
    %775 = vmatprep.subr.mxu0 0.0
    %776 = vmatpush1.xpose.msra.mxu0 0.0
    %777 = vmatprep.subr.mxu0 0.0
    %778 = vmatpush1.xpose.msra.mxu0 0.0
    %779 = vmatprep.subr.mxu0 0.0
    %780 = vmatpush1.xpose.msra.mxu0 0.0
    %781 = vmatprep.subr.mxu0 0.0
    %782 = vmatpush1.xpose.msra.mxu0 0.0
    %783 = vmatprep.subr.mxu0 0.0
    %784 = vmatpush1.xpose.msra.mxu0 0.0
    %785 = vmatprep.subr.mxu0 0.0
    %786 = vmatpush1.xpose.msra.mxu0 0.0
    %787 = vmatprep.subr.mxu0 0.0
    %788 = vmatpush1.xpose.msra.mxu0 0.0
    %789 = vmatprep.subr.mxu0 0.0
    %790 = vmatpush1.xpose.msra.mxu0 0.0
    %791 = vmatprep.subr.mxu0 0.0
    %792 = vmatpush1.xpose.msra.mxu0 0.0
    %793 = vmatprep.subr.mxu0 0.0
    %794 = vmatpush1.xpose.msra.mxu0 0.0
    %795 = vmatprep.subr.mxu0 0.0
    %796 = vmatpush1.xpose.msra.mxu0 0.0
    %797 = vmatprep.subr.mxu0 0.0
    %798 = vmatpush1.xpose.msra.mxu0 0.0
    %799 = vmatprep.subr.mxu0 0.0
    %800 = vmatpush1.xpose.msra.mxu0 0.0
    %801 = vmatprep.mubr.f32.mxu0 0.0
    %802 = vmatmul.mubr.f32.gmra.mrb[0].mxu0 %v687
    %v803 = vpop.f32.mrb[0].mxu0
    %v804 = vadd.f32 0.0, %v803
    %v805 = vpop.f32.mrb[0].mxu0
    %806 = vdwg.mxu0
    %v808 = vsel %vm685, %v652, 0
    %v811 = vsel %vm685, %v669, 0
    %v814 = vsel %vm685, %v670, 0
    %v817 = vsel %vm685, %v671, 0
    %v820 = vsel %vm685, %v672, 0
    %v823 = vsel %vm685, %v673, 0
    %v826 = vsel %vm685, %v674, 0
    %v829 = vsel %vm685, %v675, 0
    %v832 = vsel %vm685, %v676, 0
    %v835 = vsel %vm685, %v677, 0
    %v838 = vsel %vm685, %v678, 0
    %v841 = vsel %vm685, %v679, 0
    %v844 = vsel %vm685, %v680, 0
    %v847 = vsel %vm685, %v681, 0
    %v850 = vsel %vm685, %v682, 0
    %v853 = vsel %vm685, %v683, 0
    %v856 = vsel %vm685, %v684, 0
    %858 = vmatprep.subr.mxu0 0.0
    %859 = vmatpush1.xpose.msra.mxu0 %v811
    %860 = vmatprep.subr.mxu0 0.0
    %861 = vmatpush1.xpose.msra.mxu0 %v814
    %862 = vmatprep.subr.mxu0 0.0
    %863 = vmatpush1.xpose.msra.mxu0 %v817
    %864 = vmatprep.subr.mxu0 0.0
    %865 = vmatpush1.xpose.msra.mxu0 %v820
    %866 = vmatprep.subr.mxu0 0.0
    %867 = vmatpush1.xpose.msra.mxu0 %v823
    %868 = vmatprep.subr.mxu0 0.0
    %869 = vmatpush1.xpose.msra.mxu0 %v826
    %870 = vmatprep.subr.mxu0 0.0
    %871 = vmatpush1.xpose.msra.mxu0 %v829
    %872 = vmatprep.subr.mxu0 0.0
    %873 = vmatpush1.xpose.msra.mxu0 %v832
    %874 = vmatprep.subr.mxu0 0.0
    %875 = vmatpush1.xpose.msra.mxu0 %v835
    %876 = vmatprep.subr.mxu0 0.0
    %877 = vmatpush1.xpose.msra.mxu0 %v838
    %878 = vmatprep.subr.mxu0 0.0
    %879 = vmatpush1.xpose.msra.mxu0 %v841
    %880 = vmatprep.subr.mxu0 0.0
    %881 = vmatpush1.xpose.msra.mxu0 %v844
    %882 = vmatprep.subr.mxu0 0.0
    %883 = vmatpush1.xpose.msra.mxu0 %v847
    %884 = vmatprep.subr.mxu0 0.0
    %885 = vmatpush1.xpose.msra.mxu0 %v850
    %886 = vmatprep.subr.mxu0 0.0
    %887 = vmatpush1.xpose.msra.mxu0 %v853
    %888 = vmatprep.subr.mxu0 0.0
    %889 = vmatpush1.xpose.msra.mxu0 %v856
    %890 = vmatprep.subr.mxu0 0.0
    %891 = vmatpush1.xpose.msra.mxu0 0.0
    %892 = vmatprep.subr.mxu0 0.0
    %893 = vmatpush1.xpose.msra.mxu0 0.0
    %894 = vmatprep.subr.mxu0 0.0
    %895 = vmatpush1.xpose.msra.mxu0 0.0
    %896 = vmatprep.subr.mxu0 0.0
    %897 = vmatpush1.xpose.msra.mxu0 0.0
    %898 = vmatprep.subr.mxu0 0.0
    %899 = vmatpush1.xpose.msra.mxu0 0.0
    %900 = vmatprep.subr.mxu0 0.0
    %901 = vmatpush1.xpose.msra.mxu0 0.0
    %902 = vmatprep.subr.mxu0 0.0
    %903 = vmatpush1.xpose.msra.mxu0 0.0
    %904 = vmatprep.subr.mxu0 0.0
    %905 = vmatpush1.xpose.msra.mxu0 0.0
    %906 = vmatprep.subr.mxu0 0.0
    %907 = vmatpush1.xpose.msra.mxu0 0.0
    %908 = vmatprep.subr.mxu0 0.0
    %909 = vmatpush1.xpose.msra.mxu0 0.0
    %910 = vmatprep.subr.mxu0 0.0
    %911 = vmatpush1.xpose.msra.mxu0 0.0
    %912 = vmatprep.subr.mxu0 0.0
    %913 = vmatpush1.xpose.msra.mxu0 0.0
    %914 = vmatprep.subr.mxu0 0.0
    %915 = vmatpush1.xpose.msra.mxu0 0.0
    %916 = vmatprep.subr.mxu0 0.0
    %917 = vmatpush1.xpose.msra.mxu0 0.0
    %918 = vmatprep.subr.mxu0 0.0
    %919 = vmatpush1.xpose.msra.mxu0 0.0
    %920 = vmatprep.subr.mxu0 0.0
    %921 = vmatpush1.xpose.msra.mxu0 0.0
    %922 = vmatprep.mubr.f32.mxu0 0.0
    %923 = vmatmul.mubr.f32.gmra.mrb[0].mxu0 %v808
    %v924 = vpop.f32.mrb[0].mxu0
    %v925 = vadd.f32 0.0, %v924
    %v926 = vpop.f32.mrb[0].mxu0
    %927 = vdwg.mxu0
    %v928 = vmul.f32 %v651, %v651
    %v929 = vmul.f32 %v652, %v652
    %v930 = vsel %vm685, %v928, 0.0
    %931 = vadd.xlane.f32.xlu0 %v930
    %v932 = vpop.xlane.xlu0 %931
    %v933 = vsel %vm685, %v929, 0.0
    %934 = vadd.xlane.f32.xlu0 %v933
    %v935 = vpop.xlane.xlu0 %934
    %v936 = vrsqrt.pop %v932
    %v937 = vmul.f32 %v932, %v936
    %vm938 = vcmp.eq.f32.partialorder %v932, inf
    %v939 = vsel %vm938, %v932, %v937
    %vm940 = vcmp.eq.f32.partialorder %v932, 0.0
    %v941 = vand.u32 %v932, 2147483648
    %v942 = vsel %vm940, %v941, %v939
    %v943 = vrsqrt.pop %v935
    %v944 = vmul.f32 %v935, %v943
    %vm945 = vcmp.eq.f32.partialorder %v935, inf
    %v946 = vsel %vm945, %v935, %v944
    %vm947 = vcmp.eq.f32.partialorder %v935, 0.0
    %v948 = vand.u32 %v935, 2147483648
    %v949 = vsel %vm947, %v948, %v946
    %v950 = vld [vmem:[#allocation3] sm:$0x3]
    %v953 = vunpack.c.l.s4 1966171168
    %v954 = vunpack.c.0.s8 %v953
    %v955 = vlaneseq
    %v956 = vshrl.u32 %v955, 7
    %v957 = vsub.s32 %v954, %v956
    %v958 = vrot.slane %v950, %v957
    %v959 = vcombine.high %v958, %v958
    %v961 = vunpack.c.l.s4 1966171168
    %v962 = vunpack.c.0.s8 %v961
    %v963 = vlaneseq
    %v964 = vshrl.u32 %v963, 7
    %v965 = vsub.s32 %v962, %v964
    %v966 = vrot.slane %v958, %v965
    %v968 = vunpack.c.l.s4 1966171168
    %v969 = vunpack.c.0.s8 %v968
    %v970 = vlaneseq
    %v971 = vshrl.u32 %v970, 7
    %v972 = vsub.s32 %v969, %v971
    %v973 = vrot.slane %v959, %v972
    %v974 = vlaneseq
    %v975 = vshrl.u32 %v974, 7
    %v976 = vsub.s32 0, %v975
    %v977 = vrot.slane %v966, %v976
    %v978 = vlaneseq
    %v979 = vshrl.u32 %v978, 7
    %v980 = vsub.s32 0, %v979
    %v981 = vrot.slane %v973, %v980
    %v984 = vmul.f32 %v942, %v977
    %v985 = vmul.f32 %v949, %v981
    %v986 = vmax.f32 %v984, 1e-08
    %v987 = vmax.f32 %v985, 1e-08
    %v988 = vrcp.pop %v986
    %v989 = vrcp.pop %v987
    %v990 = vmul.f32 %v804, %v988
    %v991 = vmul.f32 %v925, %v989
    %v995 = vunpack.c.l.s4 1983009808
    %v996 = vunpack.c.0.s8 %v995
    %v997 = vlaneseq
    %v998 = vshrl.u32 %v997, 7
    %v999 = vsub.s32 %v996, %v998
    %v1000 = vrot.slane %v990, %v999
    %v1002 = vunpack.c.l.s4 1983009808
    %v1003 = vunpack.c.0.s8 %v1002
    %v1004 = vlaneseq
    %v1005 = vshrl.u32 %v1004, 7
    %v1006 = vsub.s32 %v1003, %v1005
    %v1007 = vrot.slane %v991, %v1006
    %vm1008 = vcmask 1044484
    %v1009 = vsel %vm1008, %v1000, %v1000
    %vm1010 = vcmask 1046534
    %v1011 = vsel %vm1010, %v1000, %v1009
    %v1012 = vrot.slane %v1007, 7
    %vm1013 = vcmask 1041409
    %v1014 = vsel %vm1013, %v1012, %v1011
    %vm1015 = vcmask 1043459
    %v1016 = vsel %vm1015, %v1012, %v1014
    %vm1017 = vcmask 1045509
    %v1018 = vsel %vm1017, %v1012, %v1016
    %vm1019 = vcmask 1047559
    %v1020 = vsel %vm1019, %v1012, %v1018
    %1022 = vst [vmem:[#allocation4] sm:$0x3] %v1020
    %v1023 = vrot.slane %v1000, 1
    %v1024 = vsel %vm1008, %v1023, %v1023
    %v1025 = vsel %vm1010, %v1023, %v1024
    %v1026 = vsel %vm1013, %v1007, %v1025
    %v1027 = vsel %vm1015, %v1007, %v1026
    %v1028 = vsel %vm1017, %v1007, %v1027
    %v1029 = vsel %vm1019, %v1007, %v1028
    %1031 = vst [vmem:[#allocation4 + $0x2] sm:$0x3] %v1029
    %v1032 = vcombine.high %v1000, %v1000
    %v1033 = vcombine.high %v1007, %v1007
    %v1034 = vsel %vm1008, %v1032, %v1032
    %v1035 = vsel %vm1010, %v1032, %v1034
    %v1036 = vrot.slane %v1033, 7
    %v1037 = vsel %vm1013, %v1036, %v1035
    %v1038 = vsel %vm1015, %v1036, %v1037
    %v1039 = vsel %vm1017, %v1036, %v1038
    %v1040 = vsel %vm1019, %v1036, %v1039
    %1042 = vst [vmem:[#allocation4 + $0x4] sm:$0x3] %v1040
    %v1043 = vrot.slane %v1032, 1
    %v1044 = vsel %vm1008, %v1043, %v1043
    %v1045 = vsel %vm1010, %v1043, %v1044
    %v1046 = vsel %vm1013, %v1033, %v1045
    %v1047 = vsel %vm1015, %v1033, %v1046
    %v1048 = vsel %vm1017, %v1033, %v1047
    %v1049 = vsel %vm1019, %v1033, %v1048
    %1051 = vst [vmem:[#allocation4 + $0x6] sm:$0x3] %v1049
    %v1052 = vcombine.high %v990, %v990
    %v1054 = vunpack.c.l.s4 1983009808
    %v1055 = vunpack.c.0.s8 %v1054
    %v1056 = vlaneseq
    %v1057 = vshrl.u32 %v1056, 7
    %v1058 = vsub.s32 %v1055, %v1057
    %v1059 = vrot.slane %v1052, %v1058
    %v1060 = vcombine.high %v991, %v991
    %v1062 = vunpack.c.l.s4 1983009808
    %v1063 = vunpack.c.0.s8 %v1062
    %v1064 = vlaneseq
    %v1065 = vshrl.u32 %v1064, 7
    %v1066 = vsub.s32 %v1063, %v1065
    %v1067 = vrot.slane %v1060, %v1066
    %v1068 = vsel %vm1008, %v1059, %v1059
    %v1069 = vsel %vm1010, %v1059, %v1068
    %v1070 = vrot.slane %v1067, 7
    %v1071 = vsel %vm1013, %v1070, %v1069
    %v1072 = vsel %vm1015, %v1070, %v1071
    %v1073 = vsel %vm1017, %v1070, %v1072
    %v1074 = vsel %vm1019, %v1070, %v1073
    %1076 = vst [vmem:[#allocation4 + $0x8] sm:$0x3] %v1074
    %v1077 = vrot.slane %v1059, 1
    %v1078 = vsel %vm1008, %v1077, %v1077
    %v1079 = vsel %vm1010, %v1077, %v1078
    %v1080 = vsel %vm1013, %v1067, %v1079
    %v1081 = vsel %vm1015, %v1067, %v1080
    %v1082 = vsel %vm1017, %v1067, %v1081
    %v1083 = vsel %vm1019, %v1067, %v1082
    %1085 = vst [vmem:[#allocation4 + $0xa] sm:$0x3] %v1083
    %v1086 = vcombine.high %v1059, %v1059
    %v1087 = vcombine.high %v1067, %v1067
    %v1088 = vsel %vm1008, %v1086, %v1086
    %v1089 = vsel %vm1010, %v1086, %v1088
    %v1090 = vrot.slane %v1087, 7
    %v1091 = vsel %vm1013, %v1090, %v1089
    %v1092 = vsel %vm1015, %v1090, %v1091
    %v1093 = vsel %vm1017, %v1090, %v1092
    %v1094 = vsel %vm1019, %v1090, %v1093
    %1096 = vst [vmem:[#allocation4 + $0xc] sm:$0x3] %v1094
    %v1097 = vrot.slane %v1086, 1
    %v1098 = vsel %vm1008, %v1097, %v1097
    %v1099 = vsel %vm1010, %v1097, %v1098
    %v1100 = vsel %vm1013, %v1087, %v1099
    %v1101 = vsel %vm1015, %v1087, %v1100
    %v1102 = vsel %vm1017, %v1087, %v1101
    %v1103 = vsel %vm1019, %v1087, %v1102
    %1105 = vst [vmem:[#allocation4 + $0xe] sm:$0x3] %v1103
    %v1106 = vld [vmem:[#allocation2] sm:$0xf]
    %v1107 = vld [vmem:[#allocation4] sm:$0xff]
    %v1108 = vld [vmem:[#allocation4 + $0x8] sm:$0xff]
    %v1109 = vld [vmem:[#allocation5] sm:$0xff]
    %v1110 = vld [vmem:[#allocation5 + $0x8] sm:$0xff]
    %v1111 = vld [vmem:[#allocation5 + $0x10] sm:$0xff]
    %v1112 = vld [vmem:[#allocation5 + $0x18] sm:$0xff]
    %v1113 = vld [vmem:[#allocation5 + $0x20] sm:$0xff]
    %v1114 = vld [vmem:[#allocation5 + $0x28] sm:$0xff]
    %v1115 = vld [vmem:[#allocation5 + $0x30] sm:$0xff]
    %v1116 = vld [vmem:[#allocation5 + $0x38] sm:$0xff]
    %v1117 = vld [vmem:[#allocation5 + $0x40] sm:$0xff]
    %v1118 = vld [vmem:[#allocation5 + $0x48] sm:$0xff]
    %v1119 = vld [vmem:[#allocation5 + $0x50] sm:$0xff]
    %v1120 = vld [vmem:[#allocation5 + $0x58] sm:$0xff]
    %v1121 = vld [vmem:[#allocation5 + $0x60] sm:$0xff]
    %v1122 = vld [vmem:[#allocation5 + $0x68] sm:$0xff]
    %v1123 = vld [vmem:[#allocation5 + $0x70] sm:$0xff]
    %v1124 = vld [vmem:[#allocation5 + $0x78] sm:$0xff]
    %v1125 = vld [vmem:[#allocation5 + $0x80] sm:$0xff]
    %v1126 = vld [vmem:[#allocation5 + $0x88] sm:$0xff]
    %v1127 = vld [vmem:[#allocation5 + $0x90] sm:$0xff]
    %v1128 = vld [vmem:[#allocation5 + $0x98] sm:$0xff]
    %v1129 = vld [vmem:[#allocation5 + $0xa0] sm:$0xff]
    %v1130 = vld [vmem:[#allocation5 + $0xa8] sm:$0xff]
    %v1131 = vld [vmem:[#allocation5 + $0xb0] sm:$0xff]
    %v1132 = vld [vmem:[#allocation5 + $0xb8] sm:$0xff]
    %v1133 = vld [vmem:[#allocation5 + $0xc0] sm:$0xff]
    %v1134 = vld [vmem:[#allocation5 + $0xc8] sm:$0xff]
    %v1135 = vld [vmem:[#allocation5 + $0xd0] sm:$0xff]
    %v1136 = vld [vmem:[#allocation5 + $0xd8] sm:$0xff]
    %v1137 = vld [vmem:[#allocation5 + $0xe0] sm:$0xff]
    %v1138 = vld [vmem:[#allocation5 + $0xe8] sm:$0xff]
    %v1139 = vld [vmem:[#allocation5 + $0xf0] sm:$0xff]
    %v1140 = vld [vmem:[#allocation5 + $0xf8] sm:$0xff]
    %v1141 = vld [vmem:[#allocation5 + $0x100] sm:$0xff]
    %v1142 = vld [vmem:[#allocation5 + $0x108] sm:$0xff]
    %v1143 = vld [vmem:[#allocation5 + $0x110] sm:$0xff]
    %v1144 = vld [vmem:[#allocation5 + $0x118] sm:$0xff]
    %v1145 = vld [vmem:[#allocation5 + $0x120] sm:$0xff]
    %v1146 = vld [vmem:[#allocation5 + $0x128] sm:$0xff]
    %v1147 = vld [vmem:[#allocation5 + $0x130] sm:$0xff]
    %v1148 = vld [vmem:[#allocation5 + $0x138] sm:$0xff]
    %v1149 = vld [vmem:[#allocation5 + $0x140] sm:$0xff]
    %v1150 = vld [vmem:[#allocation5 + $0x148] sm:$0xff]
    %v1151 = vld [vmem:[#allocation5 + $0x150] sm:$0xff]
    %v1152 = vld [vmem:[#allocation5 + $0x158] sm:$0xff]
    %v1153 = vld [vmem:[#allocation5 + $0x160] sm:$0xff]
    %v1154 = vld [vmem:[#allocation5 + $0x168] sm:$0xff]
    %v1155 = vld [vmem:[#allocation5 + $0x170] sm:$0xff]
    %v1156 = vld [vmem:[#allocation5 + $0x178] sm:$0xff]
    %v1157 = vld [vmem:[#allocation5 + $0x180] sm:$0xff]
    %v1158 = vld [vmem:[#allocation5 + $0x188] sm:$0xff]
    %v1159 = vld [vmem:[#allocation5 + $0x190] sm:$0xff]
    %v1160 = vld [vmem:[#allocation5 + $0x198] sm:$0xff]
    %v1161 = vld [vmem:[#allocation5 + $0x1a0] sm:$0xff]
    %v1162 = vld [vmem:[#allocation5 + $0x1a8] sm:$0xff]
    %v1163 = vld [vmem:[#allocation5 + $0x1b0] sm:$0xff]
    %v1164 = vld [vmem:[#allocation5 + $0x1b8] sm:$0xff]
    %v1165 = vld [vmem:[#allocation5 + $0x1c0] sm:$0xff]
    %v1166 = vld [vmem:[#allocation5 + $0x1c8] sm:$0xff]
    %v1167 = vld [vmem:[#allocation5 + $0x1d0] sm:$0xff]
    %v1168 = vld [vmem:[#allocation5 + $0x1d8] sm:$0xff]
    %v1169 = vld [vmem:[#allocation5 + $0x1e0] sm:$0xff]
    %v1170 = vld [vmem:[#allocation5 + $0x1e8] sm:$0xff]
    %v1171 = vld [vmem:[#allocation5 + $0x1f0] sm:$0xff]
    %v1172 = vld [vmem:[#allocation5 + $0x1f8] sm:$0xff]
    %v1173 = vld [vmem:[#allocation5 + $0x200] sm:$0xff]
    %v1174 = vld [vmem:[#allocation5 + $0x208] sm:$0xff]
    %v1175 = vld [vmem:[#allocation5 + $0x210] sm:$0xff]
    %v1176 = vld [vmem:[#allocation5 + $0x218] sm:$0xff]
    %v1177 = vld [vmem:[#allocation5 + $0x220] sm:$0xff]
    %v1178 = vld [vmem:[#allocation5 + $0x228] sm:$0xff]
    %v1179 = vld [vmem:[#allocation5 + $0x230] sm:$0xff]
    %v1180 = vld [vmem:[#allocation5 + $0x238] sm:$0xff]
    %v1181 = vld [vmem:[#allocation5 + $0x240] sm:$0xff]
    %v1182 = vld [vmem:[#allocation5 + $0x248] sm:$0xff]
    %v1183 = vld [vmem:[#allocation5 + $0x250] sm:$0xff]
    %v1184 = vld [vmem:[#allocation5 + $0x258] sm:$0xff]
    %v1185 = vld [vmem:[#allocation5 + $0x260] sm:$0xff]
    %v1186 = vld [vmem:[#allocation5 + $0x268] sm:$0xff]
    %v1187 = vld [vmem:[#allocation5 + $0x270] sm:$0xff]
    %v1188 = vld [vmem:[#allocation5 + $0x278] sm:$0xff]
    %v1189 = vld [vmem:[#allocation5 + $0x280] sm:$0xff]
    %v1190 = vld [vmem:[#allocation5 + $0x288] sm:$0xff]
    %v1191 = vld [vmem:[#allocation5 + $0x290] sm:$0xff]
    %v1192 = vld [vmem:[#allocation5 + $0x298] sm:$0xff]
    %v1193 = vld [vmem:[#allocation5 + $0x2a0] sm:$0xff]
    %v1194 = vld [vmem:[#allocation5 + $0x2a8] sm:$0xff]
    %v1195 = vld [vmem:[#allocation5 + $0x2b0] sm:$0xff]
    %v1196 = vld [vmem:[#allocation5 + $0x2b8] sm:$0xff]
    %v1197 = vld [vmem:[#allocation5 + $0x2c0] sm:$0xff]
    %v1198 = vld [vmem:[#allocation5 + $0x2c8] sm:$0xff]
    %v1199 = vld [vmem:[#allocation5 + $0x2d0] sm:$0xff]
    %v1200 = vld [vmem:[#allocation5 + $0x2d8] sm:$0xff]
    %v1201 = vld [vmem:[#allocation5 + $0x2e0] sm:$0xff]
    %v1202 = vld [vmem:[#allocation5 + $0x2e8] sm:$0xff]
    %v1203 = vld [vmem:[#allocation5 + $0x2f0] sm:$0xff]
    %v1204 = vld [vmem:[#allocation5 + $0x2f8] sm:$0xff]
    %v1205 = vld [vmem:[#allocation5 + $0x300] sm:$0xff]
    %v1206 = vld [vmem:[#allocation5 + $0x308] sm:$0xff]
    %v1207 = vld [vmem:[#allocation5 + $0x310] sm:$0xff]
    %v1208 = vld [vmem:[#allocation5 + $0x318] sm:$0xff]
    %v1209 = vld [vmem:[#allocation5 + $0x320] sm:$0xff]
    %v1210 = vld [vmem:[#allocation5 + $0x328] sm:$0xff]
    %v1211 = vld [vmem:[#allocation5 + $0x330] sm:$0xff]
    %v1212 = vld [vmem:[#allocation5 + $0x338] sm:$0xff]
    %v1213 = vld [vmem:[#allocation5 + $0x340] sm:$0xff]
    %v1214 = vld [vmem:[#allocation5 + $0x348] sm:$0xff]
    %v1215 = vld [vmem:[#allocation5 + $0x350] sm:$0xff]
    %v1216 = vld [vmem:[#allocation5 + $0x358] sm:$0xff]
    %v1217 = vld [vmem:[#allocation5 + $0x360] sm:$0xff]
    %v1218 = vld [vmem:[#allocation5 + $0x368] sm:$0xff]
    %v1219 = vld [vmem:[#allocation5 + $0x370] sm:$0xff]
    %v1220 = vld [vmem:[#allocation5 + $0x378] sm:$0xff]
    %v1221 = vld [vmem:[#allocation5 + $0x380] sm:$0xff]
    %v1222 = vld [vmem:[#allocation5 + $0x388] sm:$0xff]
    %v1223 = vld [vmem:[#allocation5 + $0x390] sm:$0xff]
    %v1224 = vld [vmem:[#allocation5 + $0x398] sm:$0xff]
    %v1225 = vld [vmem:[#allocation5 + $0x3a0] sm:$0xff]
    %v1226 = vld [vmem:[#allocation5 + $0x3a8] sm:$0xff]
    %v1227 = vld [vmem:[#allocation5 + $0x3b0] sm:$0xff]
    %v1228 = vld [vmem:[#allocation5 + $0x3b8] sm:$0xff]
    %v1229 = vld [vmem:[#allocation5 + $0x3c0] sm:$0xff]
    %v1230 = vld [vmem:[#allocation5 + $0x3c8] sm:$0xff]
    %v1231 = vld [vmem:[#allocation5 + $0x3d0] sm:$0xff]
    %v1232 = vld [vmem:[#allocation5 + $0x3d8] sm:$0xff]
    %v1233 = vld [vmem:[#allocation5 + $0x3e0] sm:$0xff]
    %v1234 = vld [vmem:[#allocation5 + $0x3e8] sm:$0xff]
    %v1235 = vld [vmem:[#allocation5 + $0x3f0] sm:$0xff]
    %v1236 = vld [vmem:[#allocation5 + $0x3f8] sm:$0xff]
    %v1237 = vld [vmem:[#allocation5 + $0x400] sm:$0xff]
    %v1238 = vld [vmem:[#allocation5 + $0x408] sm:$0xff]
    %v1239 = vld [vmem:[#allocation5 + $0x410] sm:$0xff]
    %v1240 = vld [vmem:[#allocation5 + $0x418] sm:$0xff]
    %v1241 = vld [vmem:[#allocation5 + $0x420] sm:$0xff]
    %v1242 = vld [vmem:[#allocation5 + $0x428] sm:$0xff]
    %v1243 = vld [vmem:[#allocation5 + $0x430] sm:$0xff]
    %v1244 = vld [vmem:[#allocation5 + $0x438] sm:$0xff]
    %v1245 = vld [vmem:[#allocation5 + $0x440] sm:$0xff]
    %v1246 = vld [vmem:[#allocation5 + $0x448] sm:$0xff]
    %v1247 = vld [vmem:[#allocation5 + $0x450] sm:$0xff]
    %v1248 = vld [vmem:[#allocation5 + $0x458] sm:$0xff]
    %v1249 = vld [vmem:[#allocation5 + $0x460] sm:$0xff]
    %v1250 = vld [vmem:[#allocation5 + $0x468] sm:$0xff]
    %v1251 = vld [vmem:[#allocation5 + $0x470] sm:$0xff]
    %v1252 = vld [vmem:[#allocation5 + $0x478] sm:$0xff]
    %v1253 = vld [vmem:[#allocation5 + $0x480] sm:$0xff]
    %v1254 = vld [vmem:[#allocation5 + $0x488] sm:$0xff]
    %v1255 = vld [vmem:[#allocation5 + $0x490] sm:$0xff]
    %v1256 = vld [vmem:[#allocation5 + $0x498] sm:$0xff]
    %v1257 = vld [vmem:[#allocation5 + $0x4a0] sm:$0xff]
    %v1258 = vld [vmem:[#allocation5 + $0x4a8] sm:$0xff]
    %v1259 = vld [vmem:[#allocation5 + $0x4b0] sm:$0xff]
    %v1260 = vld [vmem:[#allocation5 + $0x4b8] sm:$0xff]
    %v1261 = vld [vmem:[#allocation5 + $0x4c0] sm:$0xff]
    %v1262 = vld [vmem:[#allocation5 + $0x4c8] sm:$0xff]
    %v1263 = vld [vmem:[#allocation5 + $0x4d0] sm:$0xff]
    %v1264 = vld [vmem:[#allocation5 + $0x4d8] sm:$0xff]
    %v1265 = vld [vmem:[#allocation5 + $0x4e0] sm:$0xff]
    %v1266 = vld [vmem:[#allocation5 + $0x4e8] sm:$0xff]
    %v1267 = vld [vmem:[#allocation5 + $0x4f0] sm:$0xff]
    %v1268 = vld [vmem:[#allocation5 + $0x4f8] sm:$0xff]
    %v1269 = vld [vmem:[#allocation5 + $0x500] sm:$0xff]
    %v1270 = vld [vmem:[#allocation5 + $0x508] sm:$0xff]
    %v1271 = vld [vmem:[#allocation5 + $0x510] sm:$0xff]
    %v1272 = vld [vmem:[#allocation5 + $0x518] sm:$0xff]
    %v1273 = vld [vmem:[#allocation5 + $0x520] sm:$0xff]
    %v1274 = vld [vmem:[#allocation5 + $0x528] sm:$0xff]
    %v1275 = vld [vmem:[#allocation5 + $0x530] sm:$0xff]
    %v1276 = vld [vmem:[#allocation5 + $0x538] sm:$0xff]
    %v1277 = vld [vmem:[#allocation5 + $0x540] sm:$0xff]
    %v1278 = vld [vmem:[#allocation5 + $0x548] sm:$0xff]
    %v1279 = vld [vmem:[#allocation5 + $0x550] sm:$0xff]
    %v1280 = vld [vmem:[#allocation5 + $0x558] sm:$0xff]
    %v1281 = vld [vmem:[#allocation5 + $0x560] sm:$0xff]
    %v1282 = vld [vmem:[#allocation5 + $0x568] sm:$0xff]
    %v1283 = vld [vmem:[#allocation5 + $0x570] sm:$0xff]
    %v1284 = vld [vmem:[#allocation5 + $0x578] sm:$0xff]
    %v1285 = vld [vmem:[#allocation5 + $0x580] sm:$0xff]
    %v1286 = vld [vmem:[#allocation5 + $0x588] sm:$0xff]
    %v1287 = vld [vmem:[#allocation5 + $0x590] sm:$0xff]
    %v1288 = vld [vmem:[#allocation5 + $0x598] sm:$0xff]
    %v1289 = vld [vmem:[#allocation5 + $0x5a0] sm:$0xff]
    %v1290 = vld [vmem:[#allocation5 + $0x5a8] sm:$0xff]
    %v1291 = vld [vmem:[#allocation5 + $0x5b0] sm:$0xff]
    %v1292 = vld [vmem:[#allocation5 + $0x5b8] sm:$0xff]
    %v1293 = vld [vmem:[#allocation5 + $0x5c0] sm:$0xff]
    %v1294 = vld [vmem:[#allocation5 + $0x5c8] sm:$0xff]
    %v1295 = vld [vmem:[#allocation5 + $0x5d0] sm:$0xff]
    %v1296 = vld [vmem:[#allocation5 + $0x5d8] sm:$0xff]
    %v1297 = vld [vmem:[#allocation5 + $0x5e0] sm:$0xff]
    %v1298 = vld [vmem:[#allocation5 + $0x5e8] sm:$0xff]
    %v1299 = vld [vmem:[#allocation5 + $0x5f0] sm:$0xff]
    %v1300 = vld [vmem:[#allocation5 + $0x5f8] sm:$0xff]
    %v1301 = vld [vmem:[#allocation5 + $0x600] sm:$0xff]
    %v1302 = vld [vmem:[#allocation5 + $0x608] sm:$0xff]
    %v1303 = vld [vmem:[#allocation5 + $0x610] sm:$0xff]
    %v1304 = vld [vmem:[#allocation5 + $0x618] sm:$0xff]
    %v1305 = vld [vmem:[#allocation5 + $0x620] sm:$0xff]
    %v1306 = vld [vmem:[#allocation5 + $0x628] sm:$0xff]
    %v1307 = vld [vmem:[#allocation5 + $0x630] sm:$0xff]
    %v1308 = vld [vmem:[#allocation5 + $0x638] sm:$0xff]
    %v1309 = vld [vmem:[#allocation5 + $0x640] sm:$0xff]
    %v1310 = vld [vmem:[#allocation5 + $0x648] sm:$0xff]
    %v1311 = vld [vmem:[#allocation5 + $0x650] sm:$0xff]
    %v1312 = vld [vmem:[#allocation5 + $0x658] sm:$0xff]
    %v1313 = vld [vmem:[#allocation5 + $0x660] sm:$0xff]
    %v1314 = vld [vmem:[#allocation5 + $0x668] sm:$0xff]
    %v1315 = vld [vmem:[#allocation5 + $0x670] sm:$0xff]
    %v1316 = vld [vmem:[#allocation5 + $0x678] sm:$0xff]
    %v1317 = vld [vmem:[#allocation5 + $0x680] sm:$0xff]
    %v1318 = vld [vmem:[#allocation5 + $0x688] sm:$0xff]
    %v1319 = vld [vmem:[#allocation5 + $0x690] sm:$0xff]
    %v1320 = vld [vmem:[#allocation5 + $0x698] sm:$0xff]
    %v1321 = vld [vmem:[#allocation5 + $0x6a0] sm:$0xff]
    %v1322 = vld [vmem:[#allocation5 + $0x6a8] sm:$0xff]
    %v1323 = vld [vmem:[#allocation5 + $0x6b0] sm:$0xff]
    %v1324 = vld [vmem:[#allocation5 + $0x6b8] sm:$0xff]
    %v1325 = vld [vmem:[#allocation5 + $0x6c0] sm:$0xff]
    %v1326 = vld [vmem:[#allocation5 + $0x6c8] sm:$0xff]
    %v1327 = vld [vmem:[#allocation5 + $0x6d0] sm:$0xff]
    %v1328 = vld [vmem:[#allocation5 + $0x6d8] sm:$0xff]
    %v1329 = vld [vmem:[#allocation5 + $0x6e0] sm:$0xff]
    %v1330 = vld [vmem:[#allocation5 + $0x6e8] sm:$0xff]
    %v1331 = vld [vmem:[#allocation5 + $0x6f0] sm:$0xff]
    %v1332 = vld [vmem:[#allocation5 + $0x6f8] sm:$0xff]
    %v1333 = vld [vmem:[#allocation5 + $0x700] sm:$0xff]
    %v1334 = vld [vmem:[#allocation5 + $0x708] sm:$0xff]
    %v1335 = vld [vmem:[#allocation5 + $0x710] sm:$0xff]
    %v1336 = vld [vmem:[#allocation5 + $0x718] sm:$0xff]
    %v1337 = vld [vmem:[#allocation5 + $0x720] sm:$0xff]
    %v1338 = vld [vmem:[#allocation5 + $0x728] sm:$0xff]
    %v1339 = vld [vmem:[#allocation5 + $0x730] sm:$0xff]
    %v1340 = vld [vmem:[#allocation5 + $0x738] sm:$0xff]
    %v1341 = vld [vmem:[#allocation5 + $0x740] sm:$0xff]
    %v1342 = vld [vmem:[#allocation5 + $0x748] sm:$0xff]
    %v1343 = vld [vmem:[#allocation5 + $0x750] sm:$0xff]
    %v1344 = vld [vmem:[#allocation5 + $0x758] sm:$0xff]
    %v1345 = vld [vmem:[#allocation5 + $0x760] sm:$0xff]
    %v1346 = vld [vmem:[#allocation5 + $0x768] sm:$0xff]
    %v1347 = vld [vmem:[#allocation5 + $0x770] sm:$0xff]
    %v1348 = vld [vmem:[#allocation5 + $0x778] sm:$0xff]
    %v1349 = vld [vmem:[#allocation5 + $0x780] sm:$0xff]
    %v1350 = vld [vmem:[#allocation5 + $0x788] sm:$0xff]
    %v1351 = vld [vmem:[#allocation5 + $0x790] sm:$0xff]
    %v1352 = vld [vmem:[#allocation5 + $0x798] sm:$0xff]
    %v1353 = vld [vmem:[#allocation5 + $0x7a0] sm:$0xff]
    %v1354 = vld [vmem:[#allocation5 + $0x7a8] sm:$0xff]
    %v1355 = vld [vmem:[#allocation5 + $0x7b0] sm:$0xff]
    %v1356 = vld [vmem:[#allocation5 + $0x7b8] sm:$0xff]
    %v1357 = vld [vmem:[#allocation5 + $0x7c0] sm:$0xff]
    %v1358 = vld [vmem:[#allocation5 + $0x7c8] sm:$0xff]
    %v1359 = vld [vmem:[#allocation5 + $0x7d0] sm:$0xff]
    %v1360 = vld [vmem:[#allocation5 + $0x7d8] sm:$0xff]
    %v1361 = vld [vmem:[#allocation5 + $0x7e0] sm:$0xff]
    %v1362 = vld [vmem:[#allocation5 + $0x7e8] sm:$0xff]
    %v1363 = vld [vmem:[#allocation5 + $0x7f0] sm:$0xff]
    %v1364 = vld [vmem:[#allocation5 + $0x7f8] sm:$0xff]
    %v1367 = vcombine.high %v1107, %v1107
    %v1369 = vunpack.c.l.s4 1983009808
    %v1370 = vunpack.c.0.s8 %v1369
    %v1371 = vlaneseq
    %v1372 = vshrl.u32 %v1371, 7
    %v1373 = vsub.s32 %v1370, %v1372
    %v1374 = vrot.slane %v1107, %v1373
    %v1376 = vunpack.c.l.s4 1983009808
    %v1377 = vunpack.c.0.s8 %v1376
    %v1378 = vlaneseq
    %v1379 = vshrl.u32 %v1378, 7
    %v1380 = vsub.s32 %v1377, %v1379
    %v1381 = vrot.slane %v1367, %v1380
    %v1382 = vcombine.high %v1374, %v1374
    %v1383 = vcombine.high %v1381, %v1381
    %v1384 = vcombine.high %v1108, %v1108
    %v1386 = vunpack.c.l.s4 1983009808
    %v1387 = vunpack.c.0.s8 %v1386
    %v1388 = vlaneseq
    %v1389 = vshrl.u32 %v1388, 7
    %v1390 = vsub.s32 %v1387, %v1389
    %v1391 = vrot.slane %v1108, %v1390
    %v1393 = vunpack.c.l.s4 1983009808
    %v1394 = vunpack.c.0.s8 %v1393
    %v1395 = vlaneseq
    %v1396 = vshrl.u32 %v1395, 7
    %v1397 = vsub.s32 %v1394, %v1396
    %v1398 = vrot.slane %v1384, %v1397
    %v1399 = vcombine.high %v1391, %v1391
    %v1400 = vcombine.high %v1398, %v1398
    %1409 = vmatprep.subr.mxu0 %v1110
    %1410 = vmatpush1.msra.mxu0 %v1109
    %1411 = vmatprep.subr.mxu0 %v1112
    %1412 = vmatpush1.msra.mxu0 %v1111
    %1413 = vmatprep.subr.mxu0 %v1114
    %1414 = vmatpush1.msra.mxu0 %v1113
    %1415 = vmatprep.subr.mxu0 %v1116
    %1416 = vmatpush1.msra.mxu0 %v1115
    %1417 = vmatprep.subr.mxu0 %v1118
    %1418 = vmatpush1.msra.mxu0 %v1117
    %1419 = vmatprep.subr.mxu0 %v1120
    %1420 = vmatpush1.msra.mxu0 %v1119
    %1421 = vmatprep.subr.mxu0 %v1122
    %1422 = vmatpush1.msra.mxu0 %v1121
    %1423 = vmatprep.subr.mxu0 %v1124
    %1424 = vmatpush1.msra.mxu0 %v1123
    %1425 = vmatprep.subr.mxu0 %v1126
    %1426 = vmatpush1.msra.mxu0 %v1125
    %1427 = vmatprep.subr.mxu0 %v1128
    %1428 = vmatpush1.msra.mxu0 %v1127
    %1429 = vmatprep.subr.mxu0 %v1130
    %1430 = vmatpush1.msra.mxu0 %v1129
    %1431 = vmatprep.subr.mxu0 %v1132
    %1432 = vmatpush1.msra.mxu0 %v1131
    %1433 = vmatprep.subr.mxu0 %v1134
    %1434 = vmatpush1.msra.mxu0 %v1133
    %1435 = vmatprep.subr.mxu0 %v1136
    %1436 = vmatpush1.msra.mxu0 %v1135
    %1437 = vmatprep.subr.mxu0 %v1138
    %1438 = vmatpush1.msra.mxu0 %v1137
    %1439 = vmatprep.subr.mxu0 %v1140
    %1440 = vmatpush1.msra.mxu0 %v1139
    %1441 = vmatprep.subr.mxu0 %v1142
    %1442 = vmatpush1.msra.mxu0 %v1141
    %1443 = vmatprep.subr.mxu0 %v1144
    %1444 = vmatpush1.msra.mxu0 %v1143
    %1445 = vmatprep.subr.mxu0 %v1146
    %1446 = vmatpush1.msra.mxu0 %v1145
    %1447 = vmatprep.subr.mxu0 %v1148
    %1448 = vmatpush1.msra.mxu0 %v1147
    %1449 = vmatprep.subr.mxu0 %v1150
    %1450 = vmatpush1.msra.mxu0 %v1149
    %1451 = vmatprep.subr.mxu0 %v1152
    %1452 = vmatpush1.msra.mxu0 %v1151
    %1453 = vmatprep.subr.mxu0 %v1154
    %1454 = vmatpush1.msra.mxu0 %v1153
    %1455 = vmatprep.subr.mxu0 %v1156
    %1456 = vmatpush1.msra.mxu0 %v1155
    %1457 = vmatprep.subr.mxu0 %v1158
    %1458 = vmatpush1.msra.mxu0 %v1157
    %1459 = vmatprep.subr.mxu0 %v1160
    %1460 = vmatpush1.msra.mxu0 %v1159
    %1461 = vmatprep.subr.mxu0 %v1162
    %1462 = vmatpush1.msra.mxu0 %v1161
    %1463 = vmatprep.subr.mxu0 %v1164
    %1464 = vmatpush1.msra.mxu0 %v1163
    %1465 = vmatprep.subr.mxu0 %v1166
    %1466 = vmatpush1.msra.mxu0 %v1165
    %1467 = vmatprep.subr.mxu0 %v1168
    %1468 = vmatpush1.msra.mxu0 %v1167
    %1469 = vmatprep.subr.mxu0 %v1170
    %1470 = vmatpush1.msra.mxu0 %v1169
    %1471 = vmatprep.subr.mxu0 %v1172
    %1472 = vmatpush1.msra.mxu0 %v1171
    %1473 = vmatprep.mubr.f32.mxu0 %v1382
    %1474 = vmatmul.mubr.f32.gmra.mrb[0].mxu0 %v1374
    %v1475 = vpop.f32.mrb[0].mxu0
    %v1476 = vadd.f32 0.0, %v1475
    %v1477 = vpop.f32.mrb[0].mxu0
    %v1478 = vadd.f32 0.0, %v1477
    %1479 = vdwg.mxu0
    %1480 = vmatprep.subr.mxu0 %v1174
    %1481 = vmatpush1.msra.mxu0 %v1173
    %1482 = vmatprep.subr.mxu0 %v1176
    %1483 = vmatpush1.msra.mxu0 %v1175
    %1484 = vmatprep.subr.mxu0 %v1178
    %1485 = vmatpush1.msra.mxu0 %v1177
    %1486 = vmatprep.subr.mxu0 %v1180
    %1487 = vmatpush1.msra.mxu0 %v1179
    %1488 = vmatprep.subr.mxu0 %v1182
    %1489 = vmatpush1.msra.mxu0 %v1181
    %1490 = vmatprep.subr.mxu0 %v1184
    %1491 = vmatpush1.msra.mxu0 %v1183
    %1492 = vmatprep.subr.mxu0 %v1186
    %1493 = vmatpush1.msra.mxu0 %v1185
    %1494 = vmatprep.subr.mxu0 %v1188
    %1495 = vmatpush1.msra.mxu0 %v1187
    %1496 = vmatprep.subr.mxu0 %v1190
    %1497 = vmatpush1.msra.mxu0 %v1189
    %1498 = vmatprep.subr.mxu0 %v1192
    %1499 = vmatpush1.msra.mxu0 %v1191
    %1500 = vmatprep.subr.mxu0 %v1194
    %1501 = vmatpush1.msra.mxu0 %v1193
    %1502 = vmatprep.subr.mxu0 %v1196
    %1503 = vmatpush1.msra.mxu0 %v1195
    %1504 = vmatprep.subr.mxu0 %v1198
    %1505 = vmatpush1.msra.mxu0 %v1197
    %1506 = vmatprep.subr.mxu0 %v1200
    %1507 = vmatpush1.msra.mxu0 %v1199
    %1508 = vmatprep.subr.mxu0 %v1202
    %1509 = vmatpush1.msra.mxu0 %v1201
    %1510 = vmatprep.subr.mxu0 %v1204
    %1511 = vmatpush1.msra.mxu0 %v1203
    %1512 = vmatprep.subr.mxu0 %v1206
    %1513 = vmatpush1.msra.mxu0 %v1205
    %1514 = vmatprep.subr.mxu0 %v1208
    %1515 = vmatpush1.msra.mxu0 %v1207
    %1516 = vmatprep.subr.mxu0 %v1210
    %1517 = vmatpush1.msra.mxu0 %v1209
    %1518 = vmatprep.subr.mxu0 %v1212
    %1519 = vmatpush1.msra.mxu0 %v1211
    %1520 = vmatprep.subr.mxu0 %v1214
    %1521 = vmatpush1.msra.mxu0 %v1213
    %1522 = vmatprep.subr.mxu0 %v1216
    %1523 = vmatpush1.msra.mxu0 %v1215
    %1524 = vmatprep.subr.mxu0 %v1218
    %1525 = vmatpush1.msra.mxu0 %v1217
    %1526 = vmatprep.subr.mxu0 %v1220
    %1527 = vmatpush1.msra.mxu0 %v1219
    %1528 = vmatprep.subr.mxu0 %v1222
    %1529 = vmatpush1.msra.mxu0 %v1221
    %1530 = vmatprep.subr.mxu0 %v1224
    %1531 = vmatpush1.msra.mxu0 %v1223
    %1532 = vmatprep.subr.mxu0 %v1226
    %1533 = vmatpush1.msra.mxu0 %v1225
    %1534 = vmatprep.subr.mxu0 %v1228
    %1535 = vmatpush1.msra.mxu0 %v1227
    %1536 = vmatprep.subr.mxu0 %v1230
    %1537 = vmatpush1.msra.mxu0 %v1229
    %1538 = vmatprep.subr.mxu0 %v1232
    %1539 = vmatpush1.msra.mxu0 %v1231
    %1540 = vmatprep.subr.mxu0 %v1234
    %1541 = vmatpush1.msra.mxu0 %v1233
    %1542 = vmatprep.subr.mxu0 %v1236
    %1543 = vmatpush1.msra.mxu0 %v1235
    %1544 = vmatprep.mubr.f32.mxu0 %v1383
    %1545 = vmatmul.mubr.f32.gmra.mrb[0].mxu0 %v1381
    %v1546 = vpop.f32.mrb[0].mxu0
    %v1547 = vadd.f32 %v1476, %v1546
    %v1548 = vpop.f32.mrb[0].mxu0
    %v1549 = vadd.f32 %v1478, %v1548
    %1550 = vdwg.mxu0
    %1551 = vmatprep.subr.mxu0 %v1238
    %1552 = vmatpush1.msra.mxu0 %v1237
    %1553 = vmatprep.subr.mxu0 %v1240
    %1554 = vmatpush1.msra.mxu0 %v1239
    %1555 = vmatprep.subr.mxu0 %v1242
    %1556 = vmatpush1.msra.mxu0 %v1241
    %1557 = vmatprep.subr.mxu0 %v1244
    %1558 = vmatpush1.msra.mxu0 %v1243
    %1559 = vmatprep.subr.mxu0 %v1246
    %1560 = vmatpush1.msra.mxu0 %v1245
    %1561 = vmatprep.subr.mxu0 %v1248
    %1562 = vmatpush1.msra.mxu0 %v1247
    %1563 = vmatprep.subr.mxu0 %v1250
    %1564 = vmatpush1.msra.mxu0 %v1249
    %1565 = vmatprep.subr.mxu0 %v1252
    %1566 = vmatpush1.msra.mxu0 %v1251
    %1567 = vmatprep.subr.mxu0 %v1254
    %1568 = vmatpush1.msra.mxu0 %v1253
    %1569 = vmatprep.subr.mxu0 %v1256
    %1570 = vmatpush1.msra.mxu0 %v1255
    %1571 = vmatprep.subr.mxu0 %v1258
    %1572 = vmatpush1.msra.mxu0 %v1257
    %1573 = vmatprep.subr.mxu0 %v1260
    %1574 = vmatpush1.msra.mxu0 %v1259
    %1575 = vmatprep.subr.mxu0 %v1262
    %1576 = vmatpush1.msra.mxu0 %v1261
    %1577 = vmatprep.subr.mxu0 %v1264
    %1578 = vmatpush1.msra.mxu0 %v1263
    %1579 = vmatprep.subr.mxu0 %v1266
    %1580 = vmatpush1.msra.mxu0 %v1265
    %1581 = vmatprep.subr.mxu0 %v1268
    %1582 = vmatpush1.msra.mxu0 %v1267
    %1583 = vmatprep.subr.mxu0 %v1270
    %1584 = vmatpush1.msra.mxu0 %v1269
    %1585 = vmatprep.subr.mxu0 %v1272
    %1586 = vmatpush1.msra.mxu0 %v1271
    %1587 = vmatprep.subr.mxu0 %v1274
    %1588 = vmatpush1.msra.mxu0 %v1273
    %1589 = vmatprep.subr.mxu0 %v1276
    %1590 = vmatpush1.msra.mxu0 %v1275
    %1591 = vmatprep.subr.mxu0 %v1278
    %1592 = vmatpush1.msra.mxu0 %v1277
    %1593 = vmatprep.subr.mxu0 %v1280
    %1594 = vmatpush1.msra.mxu0 %v1279
    %1595 = vmatprep.subr.mxu0 %v1282
    %1596 = vmatpush1.msra.mxu0 %v1281
    %1597 = vmatprep.subr.mxu0 %v1284
    %1598 = vmatpush1.msra.mxu0 %v1283
    %1599 = vmatprep.subr.mxu0 %v1286
    %1600 = vmatpush1.msra.mxu0 %v1285
    %1601 = vmatprep.subr.mxu0 %v1288
    %1602 = vmatpush1.msra.mxu0 %v1287
    %1603 = vmatprep.subr.mxu0 %v1290
    %1604 = vmatpush1.msra.mxu0 %v1289
    %1605 = vmatprep.subr.mxu0 %v1292
    %1606 = vmatpush1.msra.mxu0 %v1291
    %1607 = vmatprep.subr.mxu0 %v1294
    %1608 = vmatpush1.msra.mxu0 %v1293
    %1609 = vmatprep.subr.mxu0 %v1296
    %1610 = vmatpush1.msra.mxu0 %v1295
    %1611 = vmatprep.subr.mxu0 %v1298
    %1612 = vmatpush1.msra.mxu0 %v1297
    %1613 = vmatprep.subr.mxu0 %v1300
    %1614 = vmatpush1.msra.mxu0 %v1299
    %1615 = vmatprep.mubr.f32.mxu0 %v1399
    %1616 = vmatmul.mubr.f32.gmra.mrb[0].mxu0 %v1391
    %v1617 = vpop.f32.mrb[0].mxu0
    %v1618 = vadd.f32 %v1547, %v1617
    %v1619 = vpop.f32.mrb[0].mxu0
    %v1620 = vadd.f32 %v1549, %v1619
    %1621 = vdwg.mxu0
    %1622 = vmatprep.subr.mxu0 %v1302
    %1623 = vmatpush1.msra.mxu0 %v1301
    %1624 = vmatprep.subr.mxu0 %v1304
    %1625 = vmatpush1.msra.mxu0 %v1303
    %1626 = vmatprep.subr.mxu0 %v1306
    %1627 = vmatpush1.msra.mxu0 %v1305
    %1628 = vmatprep.subr.mxu0 %v1308
    %1629 = vmatpush1.msra.mxu0 %v1307
    %1630 = vmatprep.subr.mxu0 %v1310
    %1631 = vmatpush1.msra.mxu0 %v1309
    %1632 = vmatprep.subr.mxu0 %v1312
    %1633 = vmatpush1.msra.mxu0 %v1311
    %1634 = vmatprep.subr.mxu0 %v1314
    %1635 = vmatpush1.msra.mxu0 %v1313
    %1636 = vmatprep.subr.mxu0 %v1316
    %1637 = vmatpush1.msra.mxu0 %v1315
    %1638 = vmatprep.subr.mxu0 %v1318
    %1639 = vmatpush1.msra.mxu0 %v1317
    %1640 = vmatprep.subr.mxu0 %v1320
    %1641 = vmatpush1.msra.mxu0 %v1319
    %1642 = vmatprep.subr.mxu0 %v1322
    %1643 = vmatpush1.msra.mxu0 %v1321
    %1644 = vmatprep.subr.mxu0 %v1324
    %1645 = vmatpush1.msra.mxu0 %v1323
    %1646 = vmatprep.subr.mxu0 %v1326
    %1647 = vmatpush1.msra.mxu0 %v1325
    %1648 = vmatprep.subr.mxu0 %v1328
    %1649 = vmatpush1.msra.mxu0 %v1327
    %1650 = vmatprep.subr.mxu0 %v1330
    %1651 = vmatpush1.msra.mxu0 %v1329
    %1652 = vmatprep.subr.mxu0 %v1332
    %1653 = vmatpush1.msra.mxu0 %v1331
    %1654 = vmatprep.subr.mxu0 %v1334
    %1655 = vmatpush1.msra.mxu0 %v1333
    %1656 = vmatprep.subr.mxu0 %v1336
    %1657 = vmatpush1.msra.mxu0 %v1335
    %1658 = vmatprep.subr.mxu0 %v1338
    %1659 = vmatpush1.msra.mxu0 %v1337
    %1660 = vmatprep.subr.mxu0 %v1340
    %1661 = vmatpush1.msra.mxu0 %v1339
    %1662 = vmatprep.subr.mxu0 %v1342
    %1663 = vmatpush1.msra.mxu0 %v1341
    %1664 = vmatprep.subr.mxu0 %v1344
    %1665 = vmatpush1.msra.mxu0 %v1343
    %1666 = vmatprep.subr.mxu0 %v1346
    %1667 = vmatpush1.msra.mxu0 %v1345
    %1668 = vmatprep.subr.mxu0 %v1348
    %1669 = vmatpush1.msra.mxu0 %v1347
    %1670 = vmatprep.subr.mxu0 %v1350
    %1671 = vmatpush1.msra.mxu0 %v1349
    %1672 = vmatprep.subr.mxu0 %v1352
    %1673 = vmatpush1.msra.mxu0 %v1351
    %1674 = vmatprep.subr.mxu0 %v1354
    %1675 = vmatpush1.msra.mxu0 %v1353
    %1676 = vmatprep.subr.mxu0 %v1356
    %1677 = vmatpush1.msra.mxu0 %v1355
    %1678 = vmatprep.subr.mxu0 %v1358
    %1679 = vmatpush1.msra.mxu0 %v1357
    %1680 = vmatprep.subr.mxu0 %v1360
    %1681 = vmatpush1.msra.mxu0 %v1359
    %1682 = vmatprep.subr.mxu0 %v1362
    %1683 = vmatpush1.msra.mxu0 %v1361
    %1684 = vmatprep.subr.mxu0 %v1364
    %1685 = vmatpush1.msra.mxu0 %v1363
    %1686 = vmatprep.mubr.f32.mxu0 %v1400
    %1687 = vmatmul.mubr.f32.gmra.mrb[0].mxu0 %v1398
    %v1688 = vpop.f32.mrb[0].mxu0
    %v1689 = vadd.f32 %v1618, %v1688
    %v1690 = vpop.f32.mrb[0].mxu0
    %v1691 = vadd.f32 %v1620, %v1690
    %1692 = vdwg.mxu0
    %v1695 = vcombine.low %v1689, %v1691
    %v1697 = vunpack.c.l.s4 1983009808
    %v1698 = vunpack.c.0.s8 %v1697
    %v1699 = vlaneseq
    %v1700 = vshrl.u32 %v1699, 7
    %v1701 = vsub.s32 %v1698, %v1700
    %v1702 = vrot.slane %v1695, %v1701
    %v1704 = vadd.f32 %v1106, %v1702
    %1705 = vst [vmem:[#allocation2] sm:$0xf] %v1704
    // Predicated region
    $region26: #{tpu_custom_call.1} parent=1 // pred_check
      %p1706 = pneg %p35
    $region27: #{tpu_custom_call.1} parent=1 // pred_check_branch
      %1708 = sbr.rel (%p1706) target = $region29
    $region28: #{tpu_custom_call.1} parent=1 // pred_region
      %v1709 = vld [vmem:[#allocation2] sm:$0xf]
      %v1710 = vld [vmem:[%s3] sm:$0x3]
      %v1712 = vlaneseq
      %v1713 = vshrl.u32 %v1712, 7
      %v1714 = vsub.s32 0, %v1713
      %v1715 = vrot.slane %v1710, %v1714
      %v1716 = vlaneseq
      %v1717 = vshrl.u32 %v1716, 7
      %v1718 = vsub.s32 1, %v1717
      %v1719 = vrot.slane %v1710, %v1718
      %v1720 = vcombine.low %v1715, %v1719
      %v1722 = vunpack.c.l.s4 1983009808
      %v1723 = vunpack.c.0.s8 %v1722
      %v1724 = vlaneseq
      %v1725 = vshrl.u32 %v1724, 7
      %v1726 = vsub.s32 %v1723, %v1725
      %v1727 = vrot.slane %v1720, %v1726
      %v1729 = vadd.f32 %v1709, %v1727
      %vm1730 = vcmask 33792
      %v1731 = vsel %vm1730, %v1729, -inf
      %1732 = vmax.xlane.f32.xlu0 %v1731
      %v1733 = vpop.xlane.xlu0 %1732
      %v1734 = vsub.f32 %v1729, %v1733
      %v1735 = vmul.f32 %v1734, 1.442695
      %v1736 = vpow.pop %v1735
      %v1737 = vsel %vm1730, %v1736, 0.0
      %1738 = vadd.xlane.f32.xlu0 %v1737
      %v1739 = vpop.xlane.xlu0 %1738
      %v1740 = vrcp.pop %v1739
      %v1741 = vmul.f32 %v1736, %v1740
      %1742 = vst.msk [vmem:[#allocation8] sm:$0x3] %vm1730, %v1741
      %v1745 = vunpack.c.l.s4 1983009808
      %v1746 = vunpack.c.0.s8 %v1745
      %v1747 = vlaneseq
      %v1748 = vshrl.u32 %v1747, 7
      %v1749 = vsub.s32 %v1746, %v1748
      %v1750 = vrot.slane %v1729, %v1749
      %v1751 = vcombine.high %v1750, %v1750
      %vm1753 = vcmask 17408
      %v1754 = vsel %vm1753, %v1751, -inf
      %1755 = vmax.xlane.f32.xlu0 %v1754
      %v1756 = vpop.xlane.xlu0 %1755
      %v1757 = vrot.slane %v1729, 2
      %v1759 = vsub.f32 %v1757, %v1756
      %v1760 = vmul.f32 %v1759, 1.442695
      %v1761 = vpow.pop %v1760
      %v1762 = vsel %vm1753, %v1761, 0.0
      %1763 = vadd.xlane.f32.xlu0 %v1762
      %v1764 = vpop.xlane.xlu0 %1763
      %v1765 = vrcp.pop %v1764
      %v1766 = vmul.f32 %v1761, %v1765
      %1767 = vst.msk [vmem:[#allocation9] sm:$0x3] %vm1753, %v1766
    $region29: #{tpu_custom_call.1} parent=1 // pred_fallthru
      _
    // Predicated region
    $region30: #{tpu_custom_call.1} parent=1 // pred_check
      _
    $region31: #{tpu_custom_call.1} parent=1 // pred_check_branch
      %1769 = sbr.rel (0) target = $region33
    $region32: #{tpu_custom_call.1} parent=1 // pred_region
      %s1771 = ssub.s32 32, 32
      %1772 = vsyncadd [#allocation7], %s1771
      %s1774 = sshll.u32 [#allocation8], 4
      %s1775 = int_to_ptr.vmem [resolvable:$true] %s1774
      %1777 = dma.vmem_to_hbm [thread:$0]  %s1775, 32, %s4, [#allocation7]
    $region33: #{tpu_custom_call.1} parent=1 // pred_fallthru
      _
    // Predicated region
    $region34: #{tpu_custom_call.1} parent=1 // pred_check
      _
    $region35: #{tpu_custom_call.1} parent=1 // pred_check_branch
      %1779 = sbr.rel (0) target = $region37
    $region36: #{tpu_custom_call.1} parent=1 // pred_region
      %s1781 = ssub.s32 32, 32
      %1782 = vsyncadd [#allocation10], %s1781
      %s1784 = sshll.u32 [#allocation9], 4
      %s1785 = int_to_ptr.vmem [resolvable:$true] %s1784
      %1787 = dma.vmem_to_hbm [thread:$0]  %s1785, 32, %s5, [#allocation10]
    $region37: #{tpu_custom_call.1} parent=1 // pred_fallthru
      _
    // Predicated region
    $region38: #{tpu_custom_call.1} parent=1 // pred_check
      _
    $region39: #{tpu_custom_call.1} parent=1 // pred_check_branch
      %1789 = sbr.rel (0) target = $region41
    $region40: #{tpu_custom_call.1} parent=1 // pred_region
      %1790 = dma.done [#allocation7], 32
    $region41: #{tpu_custom_call.1} parent=1 // pred_fallthru
      _
    // Predicated region
    $region42: #{tpu_custom_call.1} parent=1 // pred_check
      _
    $region43: #{tpu_custom_call.1} parent=1 // pred_check_branch
      %1792 = sbr.rel (0) target = $region45
    $region44: #{tpu_custom_call.1} parent=1 // pred_region
      %1793 = dma.done [#allocation10], 32
    $region45: #{tpu_custom_call.1} parent=1 // pred_fallthru
      _
    %1794 = vsyncpa [#allocation6], 1
    %1795 = vsyncpa [#allocation7], 1
    %1796 = vsyncpa [#allocation10], 1

</llo_original>
